<compile_context>
chip_gen: v6e
topology: v6e:2x2x1
jax: 0.10.0
libtpu: 0.0.40
codegen_flags: <defaults>
</compile_context>

<pallas_src>
import functools

import jax
import jax.numpy as jnp
from jax import lax
from jax.experimental import pallas as pl
from jax.experimental.pallas import tpu as pltpu

IMAGE_SIZE = 256        # forced by `net.view(-1, 1024)` after the stride-2 conv6 (32*32 == 1024)
IMAGE_CHANNELS = 3
BN_EPS = 1e-5
HG_DEPTH = 4
LPAD = 8                # left zero-pad columns for 3x3 convs (keeps interior stores sublane-aligned)


def _round_up(x, m):
    return (x + m - 1) // m * m


def _vmem_limit_bytes():
    try:
        cap = int(pltpu.get_tpu_info().vmem_capacity_bytes)
    except Exception:
        cap = 64 * 1024 * 1024
    return min((cap * 3) // 5, 80 * 1024 * 1024)


VMEM_LIMIT = _vmem_limit_bytes()


def _cparams(*sem):
    return pltpu.CompilerParams(dimension_semantics=sem, vmem_limit_bytes=VMEM_LIMIT)


# ----------------------------------------------------------------------------
# Generic GEMM with fused prologue (per-K-column affine + ReLU) and epilogue
# (per-N-column affine + ReLU).  Used for 1x1 convs, the 7x7 stem / conv6
# (via im2col), and the final fc.
# ----------------------------------------------------------------------------
def _gemm_kernel(a_ref, b_ref, psc_ref, psh_ref, esc_ref, esh_ref, o_ref, acc_ref,
                 *, apply_prologue, prologue_relu, epilogue_relu):
    @pl.when(pl.program_id(2) == 0)
    def _():
        acc_ref[...] = jnp.zeros_like(acc_ref)

    a = a_ref[...]
    if apply_prologue:
        a = a * psc_ref[...] + psh_ref[...]
    if prologue_relu:
        a = jnp.maximum(a, 0.0)
    acc_ref[...] += jnp.dot(a, b_ref[...], preferred_element_type=jnp.float32)

    @pl.when(pl.program_id(2) == pl.num_programs(2) - 1)
    def _():
        y = acc_ref[...] * esc_ref[...] + esh_ref[...]
        if epilogue_relu:
            y = jnp.maximum(y, 0.0)
        o_ref[...] = y.astype(o_ref.dtype)


def pallas_gemm(a, b, *, prologue=None, prologue_relu=False,
                epilogue_scale=None, epilogue_shift=None, epilogue_relu=False):
    """out = epi(pro(a) @ b); the affine/ReLU pre/post processing is fused into the
    MXU matmul so a, b and the output make exactly one HBM round trip."""
    a = a.astype(jnp.float32)
    b = b.astype(jnp.float32)
    M, K = a.shape
    K2, N = b.shape
    assert K == K2
    TM = min(256, _round_up(M, 8))
    TN = min(256, _round_up(N, 128))
    ku = _round_up(K, 128)
    TK = ku if ku <= 1024 else 512
    Mp, Np, Kp = _round_up(M, TM), _round_up(N, TN), _round_up(K, TK)
    if Mp != M or Kp != K:
        a = jnp.pad(a, ((0, Mp - M), (0, Kp - K)))
    if Kp != K or Np != N:
        b = jnp.pad(b, ((0, Kp - K), (0, Np - N)))

    def vec(v, default, n, npad):
        v = default((n,), jnp.float32) if v is None else jnp.asarray(v, jnp.float32).reshape(n)
        if npad != n:
            v = jnp.pad(v, (0, npad - n))
        return v.reshape(1, npad)

    apply_pro = prologue is not None
    psc = vec(prologue[0] if apply_pro else None, jnp.ones, K, Kp)
    psh = vec(prologue[1] if apply_pro else None, jnp.zeros, K, Kp)
    esc = vec(epilogue_scale, jnp.ones, N, Np)
    esh = vec(epilogue_shift, jnp.zeros, N, Np)

    out = pl.pallas_call(
        functools.partial(_gemm_kernel, apply_prologue=apply_pro,
                          prologue_relu=prologue_relu, epilogue_relu=epilogue_relu),
        out_shape=jax.ShapeDtypeStruct((Mp, Np), jnp.float32),
        grid_spec=pltpu.PrefetchScalarGridSpec(
            num_scalar_prefetch=0,
            grid=(Mp // TM, Np // TN, Kp // TK),
            in_specs=[pl.BlockSpec((TM, TK), lambda i, j, k: (i, k)),
                      pl.BlockSpec((TK, TN), lambda i, j, k: (k, j)),
                      pl.BlockSpec((1, TK), lambda i, j, k: (0, k)),
                      pl.BlockSpec((1, TK), lambda i, j, k: (0, k)),
                      pl.BlockSpec((1, TN), lambda i, j, k: (0, j)),
                      pl.BlockSpec((1, TN), lambda i, j, k: (0, j))],
            out_specs=pl.BlockSpec((TM, TN), lambda i, j, k: (i, j)),
            scratch_shapes=[pltpu.VMEM((TM, TN), jnp.float32)]),
        compiler_params=_cparams("parallel", "parallel", "arbitrary"),
    )(a, b, psc, psh, esc, esh)
    if Mp != M or Np != N:
        out = out[:M, :N]
    return out


# ----------------------------------------------------------------------------
# Fused BN + ReLU + zero-pad + 3x3 conv (stride 1, pad 1).
# The activated, padded image is built once per batch element in a VMEM scratch
# (when the band index is 0); the 9 conv taps are accumulated with in-kernel
# matmuls; output row bands are streamed out.  No materialized im2col.
# ----------------------------------------------------------------------------
def _conv3x3_bnrelu_kernel(x_ref, s_ref, t_ref, w_ref, o_ref, pad_ref,
                           *, th, hdim, wdim, cin, cout):
    i = pl.program_id(1)

    @pl.when(i == 0)
    def _():
        pad_ref[...] = jnp.zeros(pad_ref.shape, jnp.float32)
        y = jnp.maximum(x_ref[...] * s_ref[...] + t_ref[...], 0.0)   # (1, H, W, Cin)
        pad_ref[1:hdim + 1, LPAD:LPAD + wdim, :] = y[0]

    row0 = pl.multiple_of(i * th, th)
    acc = jnp.zeros((th * wdim, cout), jnp.float32)
    for ky in range(3):
        for kx in range(3):
            xs = pad_ref[pl.ds(row0 + ky, th), pl.ds(LPAD - 1 + kx, wdim), :]
            acc = acc + jnp.dot(xs.reshape(th * wdim, cin), w_ref[ky, kx],
                                preferred_element_type=jnp.float32)
    o_ref[...] = acc.reshape(1, th, wdim, cout)


def conv3x3_bn_relu(x, scale, shift, w):
    N, H, W, Cin = x.shape
    Cout = w.shape[-1]
    th = min(H, 16)
    nb = H // th
    Wp = W + LPAD + 1
    s = scale.astype(jnp.float32).reshape(1, 1, 1, Cin)
    t = shift.astype(jnp.float32).reshape(1, 1, 1, Cin)
    return pl.pallas_call(
        functools.partial(_conv3x3_bnrelu_kernel, th=th, hdim=H, wdim=W,
                          cin=Cin, cout=Cout),
        out_shape=jax.ShapeDtypeStruct((N, H, W, Cout), jnp.float32),
        grid_spec=pltpu.PrefetchScalarGridSpec(
            num_scalar_prefetch=0,
            grid=(N, nb),
            in_specs=[pl.BlockSpec((1, H, W, Cin), lambda n, i: (n, 0, 0, 0)),
                      pl.BlockSpec((1, 1, 1, Cin), lambda n, i: (0, 0, 0, 0)),
                      pl.BlockSpec((1, 1, 1, Cin), lambda n, i: (0, 0, 0, 0)),
                      pl.BlockSpec((3, 3, Cin, Cout), lambda n, i: (0, 0, 0, 0))],
            out_specs=pl.BlockSpec((1, th, W, Cout), lambda n, i: (n, i, 0, 0)),
            scratch_shapes=[pltpu.VMEM((H + 2, Wp, Cin), jnp.float32)]),
        compiler_params=_cparams("parallel", "arbitrary"),
    )(x.astype(jnp.float32), s, t, w.astype(jnp.float32))


# ----------------------------------------------------------------------------
# Fallback conv (7x7/2 stem, 3x3/2 conv6, tiny 4x4 hourglass levels):
# XLA im2col + fused-epilogue Pallas GEMM.
# ----------------------------------------------------------------------------
def conv2d_im2col(x, w, *, stride=1, padding=0, epilogue_scale=None,
                  epilogue_shift=None, epilogue_relu=False):
    N, H, W, C = x.shape
    KH, KW, Cin, Cout = w.shape
    assert Cin == C
    xp = jnp.pad(x, ((0, 0), (padding, padding), (padding, padding), (0, 0)))
    OH = (H + 2 * padding - KH) // stride + 1
    OW = (W + 2 * padding - KW) // stride + 1
    cols = []
    for ky in range(KH):
        for kx in range(KW):
            sl = lax.slice(xp, (0, ky, kx, 0),
                           (N, ky + (OH - 1) * stride + 1,
                            kx + (OW - 1) * stride + 1, C),
                           (1, stride, stride, 1))
            cols.append(sl)
    patches = jnp.concatenate(cols, axis=-1).reshape(N * OH * OW, KH * KW * C)
    out = pallas_gemm(patches, w.reshape(KH * KW * Cin, Cout),
                      epilogue_scale=epilogue_scale, epilogue_shift=epilogue_shift,
                      epilogue_relu=epilogue_relu)
    return out.reshape(N, OH, OW, Cout)


# ----------------------------------------------------------------------------
# Elementwise affine (+ReLU) over rows — used only for the small fallback paths.
# ----------------------------------------------------------------------------
def _affine_kernel(x_ref, s_ref, t_ref, o_ref, *, relu):
    y = x_ref[...] * s_ref[...] + t_ref[...]
    if relu:
        y = jnp.maximum(y, 0.0)
    o_ref[...] = y


def pallas_affine2d(x2d, scale, shift, relu):
    M, C = x2d.shape
    R = min(1024, _round_up(M, 8))
    Mp = _round_up(M, R)
    x_p = x2d.astype(jnp.float32)
    if Mp != M:
        x_p = jnp.pad(x_p, ((0, Mp - M), (0, 0)))
    out = pl.pallas_call(
        functools.partial(_affine_kernel, relu=relu),
        out_shape=jax.ShapeDtypeStruct((Mp, C), jnp.float32),
        grid=(Mp // R,),
        in_specs=[pl.BlockSpec((R, C), lambda i: (i, 0)),
                  pl.BlockSpec((1, C), lambda i: (0, 0)),
                  pl.BlockSpec((1, C), lambda i: (0, 0))],
        out_specs=pl.BlockSpec((R, C), lambda i: (i, 0)),
        compiler_params=_cparams("parallel"),
    )(x_p, scale.astype(jnp.float32).reshape(1, C),
      shift.astype(jnp.float32).reshape(1, C))
    return out[:M] if Mp != M else out


# ----------------------------------------------------------------------------
# Fused torch.cat((out1, out2, out3), C) + residual add (one HBM pass).
# ----------------------------------------------------------------------------
def _concat_add_kernel(a_ref, b_ref, c_ref, r_ref, o_ref):
    o_ref[...] = r_ref[...] + jnp.concatenate(
        [a_ref[...], b_ref[...], c_ref[...]], axis=-1)


def concat3_add(o1, o2, o3, res):
    N, H, W, C1 = o1.shape
    C2, C3 = o2.shape[-1], o3.shape[-1]
    C = C1 + C2 + C3
    th = min(H, 16)
    nb = H // th
    return pl.pallas_call(
        _concat_add_kernel,
        out_shape=jax.ShapeDtypeStruct((N, H, W, C), jnp.float32),
        grid=(N, nb),
        in_specs=[pl.BlockSpec((1, th, W, C1), lambda n, i: (n, i, 0, 0)),
                  pl.BlockSpec((1, th, W, C2), lambda n, i: (n, i, 0, 0)),
                  pl.BlockSpec((1, th, W, C3), lambda n, i: (n, i, 0, 0)),
                  pl.BlockSpec((1, th, W, C), lambda n, i: (n, i, 0, 0))],
        out_specs=pl.BlockSpec((1, th, W, C), lambda n, i: (n, i, 0, 0)),
        compiler_params=_cparams("parallel", "arbitrary"),
    )(o1, o2, o3, res)


# ----------------------------------------------------------------------------
# 2x2/2 max pool.  The (N,H,W,C)->(N,OH,2,OW,2C) reshape is a pure row-major
# relabeling (no data reorder); the reduction runs in Pallas at full lane
# density using only aligned lane slices.
# ----------------------------------------------------------------------------
def _maxpool_kernel(x_ref, o_ref):
    c = o_ref.shape[3]
    v = x_ref[0]                                     # (to, 2, ow, 2c)
    m = jnp.maximum(v[:, 0, :, :], v[:, 1, :, :])    # max over the row pair
    o_ref[0] = jnp.maximum(m[:, :, :c], m[:, :, c:])  # max over the column pair


def max_pool_2x2(x):
    N, H, W, C = x.shape
    OH, OW = H // 2, W // 2
    xr = x.reshape(N, OH, 2, OW, 2 * C)
    to = min(OH, 16)
    nb = OH // to
    return pl.pallas_call(
        _maxpool_kernel,
        out_shape=jax.ShapeDtypeStruct((N, OH, OW, C), jnp.float32),
        grid=(N, nb),
        in_specs=[pl.BlockSpec((1, to, 2, OW, 2 * C), lambda n, i: (n, i, 0, 0, 0))],
        out_specs=pl.BlockSpec((1, to, OW, C), lambda n, i: (n, i, 0, 0)),
        compiler_params=_cparams("parallel", "arbitrary"),
    )(xr)


# ----------------------------------------------------------------------------
# Fused 2x bilinear upsample (align_corners=False) + skip-connection add.
# The small low-res map is edge-clamp padded in XLA; the 4-tap stencil is
# computed in-kernel and written in a lane-folded layout that XLA reshapes back
# for free, so the large tensors are touched exactly once.
# ----------------------------------------------------------------------------
def _upsample_add_kernel(x_ref, u_ref, o_ref):
    tb = u_ref.shape[1]
    w = u_ref.shape[3]
    i = pl.program_id(1)
    row0 = pl.multiple_of(i * tb, tb)

    def tap(dy, dx):
        return x_ref[0, pl.ds(row0 + 1 + dy, tb), pl.ds(1 + dx, w), :]

    cc = tap(0, 0)
    up = tap(-1, 0)
    dn = tap(1, 0)
    lf = tap(0, -1)
    rt = tap(0, 1)
    ul = tap(-1, -1)
    ur = tap(-1, 1)
    dl = tap(1, -1)
    dr = tap(1, 1)
    p00 = 0.5625 * cc + 0.1875 * up + 0.1875 * lf + 0.0625 * ul
    p01 = 0.5625 * cc + 0.1875 * up + 0.1875 * rt + 0.0625 * ur
    p10 = 0.5625 * cc + 0.1875 * dn + 0.1875 * lf + 0.0625 * dl
    p11 = 0.5625 * cc + 0.1875 * dn + 0.1875 * rt + 0.0625 * dr
    o_ref[0, :, 0, :, :] = jnp.concatenate([p00, p01], axis=-1) + u_ref[0, :, 0, :, :]
    o_ref[0, :, 1, :, :] = jnp.concatenate([p10, p11], axis=-1) + u_ref[0, :, 1, :, :]


def upsample2x_add(low, up1):
    # TODO(synk): implements bilinear align_corners=False (F.upsample/interpolate default).
    N, h, w, C = low.shape
    lowp = jnp.pad(low.astype(jnp.float32), ((0, 0), (1, 1), (1, 1), (0, 0)), mode='edge')
    u_f = up1.astype(jnp.float32).reshape(N, h, 2, w, 2 * C)     # free row-major reshape
    tb = min(h, 8)
    nb = h // tb
    out = pl.pallas_call(
        _upsample_add_kernel,
        out_shape=jax.ShapeDtypeStruct((N, h, 2, w, 2 * C), jnp.float32),
        grid=(N, nb),
        in_specs=[pl.BlockSpec((1, h + 2, w + 2, C), lambda n, i: (n, 0, 0, 0)),
                  pl.BlockSpec((1, tb, 2, w, 2 * C), lambda n, i: (n, i, 0, 0, 0))],
        out_specs=pl.BlockSpec((1, tb, 2, w, 2 * C), lambda n, i: (n, i, 0, 0, 0)),
        compiler_params=_cparams("parallel", "arbitrary"),
    )(lowp, u_f)
    return out.reshape(N, 2 * h, 2 * w, C)


# ----------------------------------------------------------------------------
# Network building blocks
# ----------------------------------------------------------------------------
def bn_affine(p):
    scale = p['gamma'] * jax.lax.rsqrt(p['var'] + BN_EPS)
    shift = p['beta'] - p['mean'] * scale
    return scale, shift


def _pre_act_conv3x3(x, bn, w):
    """conv3x3(relu(bn(x))), pad=1.  Fused direct kernel for maps >= 8px,
    im2col GEMM fallback for the tiny 4x4 hourglass level."""
    N, H, W, C = x.shape
    scale, shift = bn_affine(bn)
    if H >= 8 and W >= 8:
        return conv3x3_bn_relu(x, scale, shift, w)
    y = pallas_affine2d(x.reshape(-1, C), scale, shift, relu=True).reshape(x.shape)
    return conv2d_im2col(y, w, stride=1, padding=1)


def conv1x1(x, w, *, bias=None, pre_bn=None, post_bn=None, post_relu=False):
    """1x1 conv as a GEMM with optional fused pre-BN+ReLU (prologue) and
    post-BN(+bias)+ReLU (epilogue)."""
    N, H, W, Cin = x.shape
    Cout = w.shape[-1]
    prologue = bn_affine(pre_bn) if pre_bn is not None else None
    esc = None
    esh = None
    if post_bn is not None:
        s, t = bn_affine(post_bn)
        esc = s
        esh = (0.0 if bias is None else bias) * s + t
    elif bias is not None:
        esh = bias
    out = pallas_gemm(x.reshape(-1, Cin), w.reshape(Cin, Cout),
                      prologue=prologue, prologue_relu=prologue is not None,
                      epilogue_scale=esc, epilogue_shift=esh, epilogue_relu=post_relu)
    return out.reshape(N, H, W, Cout)


def conv_block_fwd(p, x):
    out1 = _pre_act_conv3x3(x, p['bn1'], p['conv1']['w'])
    out2 = _pre_act_conv3x3(out1, p['bn2'], p['conv2']['w'])
    out3 = _pre_act_conv3x3(out2, p['bn3'], p['conv3']['w'])
    if 'down_conv' in p:
        residual = conv1x1(x, p['down_conv']['w'], pre_bn=p['down_bn'])
    else:
        residual = x.astype(jnp.float32)
    return concat3_add(out1, out2, out3, residual)


def hourglass_fwd(p, level, inp):
    up1 = conv_block_fwd(p['b1_%d' % level], inp)
    # TODO(synk): nn.Dropout(0.5) treated as eval-mode identity (inference semantics).
    low1 = max_pool_2x2(inp)
    low1 = conv_block_fwd(p['b2_%d' % level], low1)
    if level > 1:
        low2 = hourglass_fwd(p, level - 1, low1)
    else:
        low2 = conv_block_fwd(p['b2_plus_%d' % level], low1)
    low3 = conv_block_fwd(p['b3_%d' % level], low2)
    return upsample2x_add(low3, up1)


def fan_use_fwd(p, x):
    # conv1 (7x7/2) with conv bias + bn1 + ReLU folded into the GEMM epilogue.
    s, t = bn_affine(p['bn1'])
    x = conv2d_im2col(x, p['conv1']['w'], stride=2, padding=3,
                      epilogue_scale=s, epilogue_shift=p['conv1']['b'] * s + t,
                      epilogue_relu=True)
    x = conv_block_fwd(p['conv2'], x)
    x = max_pool_2x2(x)
    x = conv_block_fwd(p['conv3'], x)
    x = conv_block_fwd(p['conv4'], x)
    hg = hourglass_fwd(p['m0'], HG_DEPTH, x)
    ll = conv_block_fwd(p['top_m_0'], hg)
    # conv_last0 (1x1 + bias) with bn_end0 + ReLU folded into the epilogue.
    ll = conv1x1(ll, p['conv_last0']['w'], bias=p['conv_last0']['b'],
                 post_bn=p['bn_end0'], post_relu=True)
    tmp_out = conv1x1(ll, p['l0']['w'], bias=p['l0']['b'])
    return tmp_out                                   # (N, S/4, S/4, 68)


def fan_fusion_fwd(p, x):
    """x: (B, C, S, S) NCHW like the PyTorch reference.  Returns (B, T, 256)."""
    B = x.shape[0]
    x0 = x.reshape(-1, IMAGE_CHANNELS, IMAGE_SIZE, IMAGE_SIZE)
    x0 = jnp.transpose(x0, (0, 2, 3, 1)).astype(jnp.float32)        # NCHW -> NHWC
    net = fan_use_fwd(p['model'], x0)                                # (N, 64, 64, 68)
    s, t = bn_affine(p['bn1'])                                       # relu(bn1(net))
    net = pallas_affine2d(net.reshape(-1, 68), s, t, relu=True).reshape(net.shape)
    net = conv2d_im2col(net, p['conv6']['w'], stride=2, padding=1,
                        epilogue_shift=p['conv6']['b'])              # (N, 32, 32, 1)
    net = net.reshape(-1, 1024)             # == NCHW .view(-1, 1024) since C == 1
    # F.relu before fc fused into the fc GEMM prologue; bias into its epilogue.
    net = pallas_gemm(net, p['fc_w'], prologue_relu=True, epilogue_shift=p['fc_b'])
    return net.reshape(B, -1, 256)


# ----------------------------------------------------------------------------
# Deterministic parameter construction
# ----------------------------------------------------------------------------
class _Keys:
    def __init__(self, seed=0):
        self._base = jax.random.PRNGKey(seed)
        self._i = 0

    def __call__(self):
        self._i += 1
        return jax.random.fold_in(self._base, self._i)


def conv_params(keys, kh, kw, cin, cout, bias=False):
    fan_in = kh * kw * cin
    w = jax.random.normal(keys(), (kh, kw, cin, cout), jnp.float32) * jnp.sqrt(2.0 / fan_in)
    b = (jax.random.normal(keys(), (cout,), jnp.float32) * 0.01) if bias else None
    return {'w': w, 'b': b}


def bn_params(keys, c):
    return {'gamma': jnp.ones((c,), jnp.float32) + 0.05 * jax.random.normal(keys(), (c,), jnp.float32),
            'beta': 0.05 * jax.random.normal(keys(), (c,), jnp.float32),
            'mean': jnp.zeros((c,), jnp.float32),
            'var': jnp.ones((c,), jnp.float32)}


def conv_block_params(keys, in_planes, out_planes):
    p = {'bn1': bn_params(keys, in_planes),
         'conv1': conv_params(keys, 3, 3, in_planes, out_planes // 2),
         'bn2': bn_params(keys, out_planes // 2),
         'conv2': conv_params(keys, 3, 3, out_planes // 2, out_planes // 4),
         'bn3': bn_params(keys, out_planes // 4),
         'conv3': conv_params(keys, 3, 3, out_planes // 4, out_planes // 4)}
    if in_planes != out_planes:
        p['down_bn'] = bn_params(keys, in_planes)
        p['down_conv'] = conv_params(keys, 1, 1, in_planes, out_planes)
    return p


def hourglass_params(keys, depth):
    p = {}
    for level in range(depth, 0, -1):
        p['b1_%d' % level] = conv_block_params(keys, 256, 256)
        p['b2_%d' % level] = conv_block_params(keys, 256, 256)
        if level == 1:
            p['b2_plus_%d' % level] = conv_block_params(keys, 256, 256)
        p['b3_%d' % level] = conv_block_params(keys, 256, 256)
    return p


def fan_use_params(keys):
    return {'conv1': conv_params(keys, 7, 7, 3, 64, bias=True),
            'bn1': bn_params(keys, 64),
            'conv2': conv_block_params(keys, 64, 128),
            'conv3': conv_block_params(keys, 128, 128),
            'conv4': conv_block_params(keys, 128, 256),
            'm0': hourglass_params(keys, HG_DEPTH),
            'top_m_0': conv_block_params(keys, 256, 256),
            'conv_last0': conv_params(keys, 1, 1, 256, 256, bias=True),
            'l0': conv_params(keys, 1, 1, 256, 68, bias=True),
            'bn_end0': bn_params(keys, 256)}


def fan_fusion_params(keys):
    return {'model': fan_use_params(keys),
            'bn1': bn_params(keys, 68),
            'conv6': conv_params(keys, 3, 3, 68, 1, bias=True),
            'fc_w': jax.random.normal(keys(), (1024, 256), jnp.float32) * jnp.sqrt(1.0 / 1024),
            'fc_b': jax.random.normal(keys(), (256,), jnp.float32) * 0.01}


# ----------------------------------------------------------------------------
if __name__ == "__main__":
    keys = _Keys(seed=0)
    params = fan_fusion_params(keys)

    # image_size is pinned to 256 by the reference's `net.view(-1, 1024)` (32*32 == 1024
    # after conv6); batch is kept at 1 to stay small.
    x = jax.random.normal(jax.random.PRNGKey(0),
                          (1, IMAGE_CHANNELS, IMAGE_SIZE, IMAGE_SIZE), jnp.float32)

    out = fan_fusion_fwd(params, x)
    out = jax.block_until_ready(out)

    assert out.shape == (1, 1, 256), out.shape
    assert bool(jnp.all(jnp.isfinite(out)))
    print("KERNEL_OK")
</pallas_src>

<mosaic_0001>
module attributes {stable_mosaic.version = 11 : i64} {
  func.func @_gemm_kernel(%arg0: i32, %arg1: i32, %arg2: i32, %arg3: memref<256x256xf32, #tpu.memory_space<vmem>>, %arg4: memref<256x128xf32, #tpu.memory_space<vmem>>, %arg5: memref<1x256xf32, #tpu.memory_space<vmem>>, %arg6: memref<1x256xf32, #tpu.memory_space<vmem>>, %arg7: memref<1x128xf32, #tpu.memory_space<vmem>>, %arg8: memref<1x128xf32, #tpu.memory_space<vmem>>, %arg9: memref<256x128xf32, #tpu.memory_space<vmem>>, %arg10: memref<256x128xf32, #tpu.memory_space<vmem>>) attributes {dimension_semantics = [#tpu.dimension_semantics<parallel>, #tpu.dimension_semantics<parallel>, #tpu.dimension_semantics<arbitrary>], iteration_bounds = array<i64: 64, 1, 1>, scalar_prefetch = 0 : i64, scratch_operands = 1 : i64, tpu.core_type = #tpu.core_type<tc>, window_params = [{transform_indices = @transform_0, window_bounds = array<i64: 256, 256>}, {transform_indices = @transform_1, window_bounds = array<i64: 256, 128>}, {transform_indices = @transform_2, window_bounds = array<i64: 1, 256>}, {transform_indices = @transform_3, window_bounds = array<i64: 1, 256>}, {transform_indices = @transform_4, window_bounds = array<i64: 1, 128>}, {transform_indices = @transform_5, window_bounds = array<i64: 1, 128>}, {transform_indices = @transform_6, window_bounds = array<i64: 256, 128>}]} {
    %c0_i32 = arith.constant 0 : i32
    %0 = arith.cmpi eq, %arg2, %c0_i32 : i32
    %1 = arith.extui %0 : i1 to i32
    %c0_i32_0 = arith.constant 0 : i32
    %2 = arith.cmpi ne, %1, %c0_i32_0 : i32
    scf.if %2 {
      %cst_10 = arith.constant 0.000000e+00 : f32
      %12 = vector.broadcast %cst_10 : f32 to vector<256x128xf32>
      %c0_11 = arith.constant 0 : index
      %c0_12 = arith.constant 0 : index
      %13 = vector.load %arg10[%c0_11, %c0_12] : memref<256x128xf32, #tpu.memory_space<vmem>>, vector<256x128xf32>
      tpu.vector_store %arg10[%c0_11, %c0_12], %12 {strides = array<i32>} : memref<256x128xf32, #tpu.memory_space<vmem>>, vector<256x128xf32>,
    } else {
    }
    %c0 = arith.constant 0 : index
    %c0_1 = arith.constant 0 : index
    %3 = vector.load %arg3[%c0, %c0_1] : memref<256x256xf32, #tpu.memory_space<vmem>>, vector<256x256xf32>
    %c0_2 = arith.constant 0 : index
    %c0_3 = arith.constant 0 : index
    %4 = vector.load %arg10[%c0_2, %c0_3] : memref<256x128xf32, #tpu.memory_space<vmem>>, vector<256x128xf32>
    %c0_4 = arith.constant 0 : index
    %c0_5 = arith.constant 0 : index
    %5 = vector.load %arg4[%c0_4, %c0_5] : memref<256x128xf32, #tpu.memory_space<vmem>>, vector<256x128xf32>
    %cst = arith.constant dense<0.000000e+00> : vector<256x128xf32>
    %6 = tpu.matmul %3, %5, %cst {dimension_numbers = #tpu.dot_dimension_numbers<[1], [0], [0], [1], [0, 0, 1, 1], [], []>} : vector<256x256xf32>, vector<256x128xf32>, vector<256x128xf32> -> vector<256x128xf32>
    %7 = arith.addf %4, %6 : vector<256x128xf32>
    %c0_6 = arith.constant 0 : index
    %c0_7 = arith.constant 0 : index
    %8 = vector.load %arg10[%c0_6, %c0_7] : memref<256x128xf32, #tpu.memory_space<vmem>>, vector<256x128xf32>
    tpu.vector_store %arg10[%c0_6, %c0_7], %7 {strides = array<i32>} : memref<256x128xf32, #tpu.memory_space<vmem>>, vector<256x128xf32>,
    %c0_i32_8 = arith.constant 0 : i32
    %9 = arith.cmpi eq, %arg2, %c0_i32_8 : i32
    %10 = arith.extui %9 : i1 to i32
    %c0_i32_9 = arith.constant 0 : i32
    %11 = arith.cmpi ne, %10, %c0_i32_9 : i32
    scf.if %11 {
      %c0_10 = arith.constant 0 : index
      %c0_11 = arith.constant 0 : index
      %12 = vector.load %arg10[%c0_10, %c0_11] : memref<256x128xf32, #tpu.memory_space<vmem>>, vector<256x128xf32>
      %c0_12 = arith.constant 0 : index
      %c0_13 = arith.constant 0 : index
      %13 = vector.load %arg7[%c0_12, %c0_13] : memref<1x128xf32, #tpu.memory_space<vmem>>, vector<1x128xf32>
      %14 = vector.broadcast %13 : vector<1x128xf32> to vector<256x128xf32>
      %15 = arith.mulf %12, %14 : vector<256x128xf32>
      %c0_14 = arith.constant 0 : index
      %c0_15 = arith.constant 0 : index
      %16 = vector.load %arg8[%c0_14, %c0_15] : memref<1x128xf32, #tpu.memory_space<vmem>>, vector<1x128xf32>
      %17 = vector.broadcast %16 : vector<1x128xf32> to vector<256x128xf32>
      %18 = arith.addf %15, %17 : vector<256x128xf32>
      %cst_16 = arith.constant 0.000000e+00 : f32
      %19 = vector.broadcast %cst_16 : f32 to vector<256x128xf32>
      %20 = arith.maximumf %18, %19 : vector<256x128xf32>
      %c0_17 = arith.constant 0 : index
      %c0_18 = arith.constant 0 : index
      %21 = vector.load %arg9[%c0_17, %c0_18] : memref<256x128xf32, #tpu.memory_space<vmem>>, vector<256x128xf32>
      tpu.vector_store %arg9[%c0_17, %c0_18], %20 {strides = array<i32>} : memref<256x128xf32, #tpu.memory_space<vmem>>, vector<256x128xf32>,
    } else {
    }
    return
  }
  func.func @transform_0(%arg0: i32, %arg1: i32, %arg2: i32) -> (i32, i32) {
    %c0_i32 = arith.constant 0 : i32
    return %arg0, %arg2 : i32, i32
  }
  func.func @transform_1(%arg0: i32, %arg1: i32, %arg2: i32) -> (i32, i32) {
    %c0_i32 = arith.constant 0 : i32
    return %arg2, %arg1 : i32, i32
  }
  func.func @transform_2(%arg0: i32, %arg1: i32, %arg2: i32) -> (i32, i32) {
    %c0_i32 = arith.constant 0 : i32
    %c0_i32_0 = arith.constant 0 : i32
    return %c0_i32, %arg2 : i32, i32
  }
  func.func @transform_3(%arg0: i32, %arg1: i32, %arg2: i32) -> (i32, i32) {
    %c0_i32 = arith.constant 0 : i32
    %c0_i32_0 = arith.constant 0 : i32
    return %c0_i32, %arg2 : i32, i32
  }
  func.func @transform_4(%arg0: i32, %arg1: i32, %arg2: i32) -> (i32, i32) {
    %c0_i32 = arith.constant 0 : i32
    %c0_i32_0 = arith.constant 0 : i32
    return %c0_i32, %arg1 : i32, i32
  }
  func.func @transform_5(%arg0: i32, %arg1: i32, %arg2: i32) -> (i32, i32) {
    %c0_i32 = arith.constant 0 : i32
    %c0_i32_0 = arith.constant 0 : i32
    return %c0_i32, %arg1 : i32, i32
  }
  func.func @transform_6(%arg0: i32, %arg1: i32, %arg2: i32) -> (i32, i32) {
    %c0_i32 = arith.constant 0 : i32
    return %arg0, %arg1 : i32, i32
  }
}

</mosaic_0001>

<llo_original>
// kernel: tpu_custom_call.1
$region0: #{tpu_custom_call.1}
  #allocation0 [shape = 'u32[]', space=smem, size = 0x4, offset = 0x4, fixed_abs, tag = 'smem constant byte address 0x4 - core index']
  #allocation1 [shape = 'u32[144,128]{1,0:T(1,128)}', space=vmem, size = 0x12000, scoped, tag = 'internal scratch']
  #allocation2 [shape = 'f32[256,128]{1,0:T(8,128)}', space=vmem, size = 0x20000, scoped, tag = 'scratch operand']
  %s0 = inlined_call_operand.hbm [shape: f32[16384,256], index: 0, kind: input, shape index: {}]
  %s1 = inlined_call_operand.hbm [shape: f32[256,128], index: 1, kind: input, shape index: {}]
  %s2 = inlined_call_operand.hbm [shape: f32[1,256], index: 2, kind: input, shape index: {}]
  %s3 = inlined_call_operand.hbm [shape: f32[1,256], index: 3, kind: input, shape index: {}]
  %s4 = inlined_call_operand.hbm [shape: f32[1,128], index: 4, kind: input, shape index: {}]
  %s5 = inlined_call_operand.hbm [shape: f32[1,128], index: 5, kind: input, shape index: {}]
  %s6 = inlined_call_operand.hbm [shape: f32[16384,128], index: 6, kind: output, shape index: {}]
  %s7 = sld [smem:[#allocation0]]
  $region89: #{tpu_custom_call.1} parent=0
    _
  %s9 = ssub.s32 1, %s7
  %s10 = scalar_select 0, %s9, %s7
  $region1: #{tpu_custom_call.1} parent=0
    #allocation3 [shape = 'u8[524288]{0}', space=vmem, size = 0x80000, scoped, tag = 'input window, operand 0']
    #allocation4 [shape = 's32[2]{0}', space=sflag, size = 0x8, scoped, tag = 'scoped memory for tpu_custom_call.1']
    #allocation5 [shape = 's32[2]{0}', space=sflag, size = 0x8, scoped, tag = 'scoped memory for tpu_custom_call.1']
    #allocation6 [shape = 'u8[131072]{0}', space=vmem, size = 0x20000, scoped, tag = 'input window, operand 1, single buffered']
    #allocation7 [shape = 's32[1]{0}', space=sflag, size = 0x4, scoped, tag = 'scoped memory for tpu_custom_call.1']
    #allocation8 [shape = 'u8[1024]{0}', space=vmem, size = 0x400, scoped, tag = 'input window, operand 2, single buffered']
    #allocation9 [shape = 'u8[1024]{0}', space=vmem, size = 0x400, scoped, tag = 'input window, operand 3, single buffered']
    #allocation10 [shape = 's32[1]{0}', space=sflag, size = 0x4, scoped, tag = 'scoped memory for tpu_custom_call.1']
    #allocation11 [shape = 'u8[512]{0}', space=vmem, size = 0x400, scoped, tag = 'input window, operand 4, single buffered']
    #allocation12 [shape = 'u8[512]{0}', space=vmem, size = 0x400, scoped, tag = 'input window, operand 5, single buffered']
    #allocation13 [shape = 's32[1]{0}', space=sflag, size = 0x4, scoped, tag = 'scoped memory for tpu_custom_call.1']
    #allocation14 [shape = 'u8[262144]{0}', space=vmem, size = 0x40000, scoped, tag = 'output window, operand 0']
    %11 = vsyncpa [#allocation4], 0
    %s12 = scalar_lea.sflag [#allocation4], 1
    %13 = vsyncpa %s12, 0
    %14 = vsyncpa [#allocation7], 0
    %15 = vsyncpa [#allocation10], 0
    %16 = vsyncpa [#allocation13], 0
    %17 = vsyncpa [#allocation5], 0
    %s18 = scalar_lea.sflag [#allocation5], 1
    %19 = vsyncpa %s18, 0
    loop: start=0, step=1, limit=66
    $region2: #{tpu_custom_call.1} parent=1 // loop_pre_header
      _
    $region3: #{tpu_custom_call.1} parent=1 // loop_header
      %s21 = sphi 0, %s25
      %p22 = scmp.ge.s32.totalorder %s21, 66
      %s28 = sphi 0, %s47
      %s29 = sphi 0, %s43
      %s30 = sphi 0, %s39
      %s31 = sphi 0, %s28
      %s32 = sphi 0, %s29
      %s33 = sphi 0, %s30
      %s34 = sphi 0, %s31
      %s35 = sphi 0, %s32
      %s36 = sphi 0, %s33
      %s52 = sphi 0, %s54
      %s55 = sphi 0, %s52
      %s56 = sphi 0, %s55
      %s72 = sphi 0, %s56
      %s80 = sphi 0, %s82
      %s83 = sphi 0, %s80
      %s84 = sphi 0, %s83
      %s100 = sphi 0, %s84
      %s106 = sphi 0, %s108
      %s109 = sphi 0, %s106
      %s110 = sphi 0, %s109
      %s126 = sphi 0, %s110
      %s132 = sphi 0, %s134
      %s135 = sphi 0, %s132
      %s136 = sphi 0, %s135
      %s152 = sphi 0, %s136
      %s158 = sphi 0, %s160
      %s161 = sphi 0, %s158
      %s162 = sphi 0, %s161
      %s178 = sphi 0, %s162
      %s184 = sphi 0, %s186
      %s187 = sphi 0, %s184
      %s188 = sphi 0, %s187
      %s204 = sphi 0, %s188
      %s212 = sphi 0, %s214
      %s215 = sphi 0, %s212
      %s216 = sphi 0, %s215
      %s232 = sphi 0, %s216
    $region4: #{tpu_custom_call.1} parent=1 // loop_header_branch
      %24 = sbr.rel (%p22) target = $region8
    $region5: #{tpu_custom_call.1} parent=1 // loop_body
      %s26 = ssub.s32 %s21, 1
      %s27 = ssub.s32 %s21, 2
      %s37 = sadd.s32 1, %s30
      %p38 = scmp.ge.s32.totalorder %s37, 1
      %s39 = scalar_select %p38, 0, %s37
      %s40 = sadd.s32 1, %s29
      %s41 = scalar_select %p38, %s40, %s29
      %p42 = scmp.ge.s32.totalorder %s41, 1
      %s43 = scalar_select %p42, 0, %s41
      %s44 = sadd.s32 1, %s28
      %s45 = scalar_select %p42, %s44, %s28
      %p46 = scmp.ge.s32.totalorder %s45, 64
      %s47 = scalar_select %p46, 0, %s45
      %s48 = ssub.s32 %s28, %s47
      %s49 = ssub.s32 %s30, %s39
      %s50 = sor.u32 %s48, %s49
      %p51 = scmp.eq.s32.totalorder %s50, 0
      %s53 = sadd.s32 %s52, 1
      %s54 = scalar_select %p51, %s52, %s53
      %p57 = pneg %p51
      %p58 = scmp.eq.s32.totalorder %s21, 63
      %p59 = por %p57, %p58
      %p60 = scmp.ne.s32.totalorder %s52, %s55
      %p61 = scmp.eq.s32.totalorder %s21, 0
      %p62 = por %p60, %p61
      %p63 = scmp.ne.s32.totalorder %s52, %s55
      %p64 = scmp.eq.s32.totalorder %s26, 63
      %p65 = por %p63, %p64
      %p66 = scmp.ne.s32.totalorder %s55, %s56
      %p67 = scmp.eq.s32.totalorder %s26, 0
      %p68 = por %p66, %p67
      %p69 = scmp.ne.s32.totalorder %s55, %s56
      %p70 = scmp.eq.s32.totalorder %s27, 63
      %p71 = por %p69, %p70
      %p73 = scmp.ne.s32.totalorder %s56, %s72
      %p74 = scmp.eq.s32.totalorder %s27, 0
      %p75 = por %p73, %p74
      %s76 = ssub.s32 %s30, %s39
      %s77 = ssub.s32 %s29, %s43
      %s78 = sor.u32 %s76, %s77
      %p79 = scmp.eq.s32.totalorder %s78, 0
      %s81 = sadd.s32 %s80, 1
      %s82 = scalar_select %p79, %s80, %s81
      %p85 = pneg %p79
      %p86 = scmp.eq.s32.totalorder %s21, 63
      %p87 = por %p85, %p86
      %p88 = scmp.ne.s32.totalorder %s80, %s83
      %p89 = scmp.eq.s32.totalorder %s21, 0
      %p90 = por %p88, %p89
      %p91 = scmp.ne.s32.totalorder %s80, %s83
      %p92 = scmp.eq.s32.totalorder %s26, 63
      %p93 = por %p91, %p92
      %p94 = scmp.ne.s32.totalorder %s83, %s84
      %p95 = scmp.eq.s32.totalorder %s26, 0
      %p96 = por %p94, %p95
      %p97 = scmp.ne.s32.totalorder %s83, %s84
      %p98 = scmp.eq.s32.totalorder %s27, 63
      %p99 = por %p97, %p98
      %p101 = scmp.ne.s32.totalorder %s84, %s100
      %p102 = scmp.eq.s32.totalorder %s27, 0
      %p103 = por %p101, %p102
      %s104 = ssub.s32 %s30, %s39
      %p105 = scmp.eq.s32.totalorder %s104, 0
      %s107 = sadd.s32 %s106, 1
      %s108 = scalar_select %p105, %s106, %s107
      %p111 = pneg %p105
      %p112 = scmp.eq.s32.totalorder %s21, 63
      %p113 = por %p111, %p112
      %p114 = scmp.ne.s32.totalorder %s106, %s109
      %p115 = scmp.eq.s32.totalorder %s21, 0
      %p116 = por %p114, %p115
      %p117 = scmp.ne.s32.totalorder %s106, %s109
      %p118 = scmp.eq.s32.totalorder %s26, 63
      %p119 = por %p117, %p118
      %p120 = scmp.ne.s32.totalorder %s109, %s110
      %p121 = scmp.eq.s32.totalorder %s26, 0
      %p122 = por %p120, %p121
      %p123 = scmp.ne.s32.totalorder %s109, %s110
      %p124 = scmp.eq.s32.totalorder %s27, 63
      %p125 = por %p123, %p124
      %p127 = scmp.ne.s32.totalorder %s110, %s126
      %p128 = scmp.eq.s32.totalorder %s27, 0
      %p129 = por %p127, %p128
      %s130 = ssub.s32 %s30, %s39
      %p131 = scmp.eq.s32.totalorder %s130, 0
      %s133 = sadd.s32 %s132, 1
      %s134 = scalar_select %p131, %s132, %s133
      %p137 = pneg %p131
      %p138 = scmp.eq.s32.totalorder %s21, 63
      %p139 = por %p137, %p138
      %p140 = scmp.ne.s32.totalorder %s132, %s135
      %p141 = scmp.eq.s32.totalorder %s21, 0
      %p142 = por %p140, %p141
      %p143 = scmp.ne.s32.totalorder %s132, %s135
      %p144 = scmp.eq.s32.totalorder %s26, 63
      %p145 = por %p143, %p144
      %p146 = scmp.ne.s32.totalorder %s135, %s136
      %p147 = scmp.eq.s32.totalorder %s26, 0
      %p148 = por %p146, %p147
      %p149 = scmp.ne.s32.totalorder %s135, %s136
      %p150 = scmp.eq.s32.totalorder %s27, 63
      %p151 = por %p149, %p150
      %p153 = scmp.ne.s32.totalorder %s136, %s152
      %p154 = scmp.eq.s32.totalorder %s27, 0
      %p155 = por %p153, %p154
      %s156 = ssub.s32 %s29, %s43
      %p157 = scmp.eq.s32.totalorder %s156, 0
      %s159 = sadd.s32 %s158, 1
      %s160 = scalar_select %p157, %s158, %s159
      %p163 = pneg %p157
      %p164 = scmp.eq.s32.totalorder %s21, 63
      %p165 = por %p163, %p164
      %p166 = scmp.ne.s32.totalorder %s158, %s161
      %p167 = scmp.eq.s32.totalorder %s21, 0
      %p168 = por %p166, %p167
      %p169 = scmp.ne.s32.totalorder %s158, %s161
      %p170 = scmp.eq.s32.totalorder %s26, 63
      %p171 = por %p169, %p170
      %p172 = scmp.ne.s32.totalorder %s161, %s162
      %p173 = scmp.eq.s32.totalorder %s26, 0
      %p174 = por %p172, %p173
      %p175 = scmp.ne.s32.totalorder %s161, %s162
      %p176 = scmp.eq.s32.totalorder %s27, 63
      %p177 = por %p175, %p176
      %p179 = scmp.ne.s32.totalorder %s162, %s178
      %p180 = scmp.eq.s32.totalorder %s27, 0
      %p181 = por %p179, %p180
      %s182 = ssub.s32 %s29, %s43
      %p183 = scmp.eq.s32.totalorder %s182, 0
      %s185 = sadd.s32 %s184, 1
      %s186 = scalar_select %p183, %s184, %s185
      %p189 = pneg %p183
      %p190 = scmp.eq.s32.totalorder %s21, 63
      %p191 = por %p189, %p190
      %p192 = scmp.ne.s32.totalorder %s184, %s187
      %p193 = scmp.eq.s32.totalorder %s21, 0
      %p194 = por %p192, %p193
      %p195 = scmp.ne.s32.totalorder %s184, %s187
      %p196 = scmp.eq.s32.totalorder %s26, 63
      %p197 = por %p195, %p196
      %p198 = scmp.ne.s32.totalorder %s187, %s188
      %p199 = scmp.eq.s32.totalorder %s26, 0
      %p200 = por %p198, %p199
      %p201 = scmp.ne.s32.totalorder %s187, %s188
      %p202 = scmp.eq.s32.totalorder %s27, 63
      %p203 = por %p201, %p202
      %p205 = scmp.ne.s32.totalorder %s188, %s204
      %p206 = scmp.eq.s32.totalorder %s27, 0
      %p207 = por %p205, %p206
      %s208 = ssub.s32 %s28, %s47
      %s209 = ssub.s32 %s29, %s43
      %s210 = sor.u32 %s208, %s209
      %p211 = scmp.eq.s32.totalorder %s210, 0
      %s213 = sadd.s32 %s212, 1
      %s214 = scalar_select %p211, %s212, %s213
      %p217 = pneg %p211
      %p218 = scmp.eq.s32.totalorder %s21, 63
      %p219 = por %p217, %p218
      %p220 = scmp.ne.s32.totalorder %s212, %s215
      %p221 = scmp.eq.s32.totalorder %s21, 0
      %p222 = por %p220, %p221
      %p223 = scmp.ne.s32.totalorder %s212, %s215
      %p224 = scmp.eq.s32.totalorder %s26, 63
      %p225 = por %p223, %p224
      %p226 = scmp.ne.s32.totalorder %s215, %s216
      %p227 = scmp.eq.s32.totalorder %s26, 0
      %p228 = por %p226, %p227
      %p229 = scmp.ne.s32.totalorder %s215, %s216
      %p230 = scmp.eq.s32.totalorder %s27, 63
      %p231 = por %p229, %p230
      %p233 = scmp.ne.s32.totalorder %s216, %s232
      %p234 = scmp.eq.s32.totalorder %s27, 0
      %p235 = por %p233, %p234
      %p236 = scmp.le.s32.totalorder 1, %s21
      %p237 = scmp.lt.s32.totalorder %s21, 65
      %p238 = pnand %p236, %p237
      %p239 = pneg %p238
      // Predicated region
      $region9: #{tpu_custom_call.1} parent=5 // pred_check
        _
      $region10: #{tpu_custom_call.1} parent=5 // pred_check_branch
        %241 = sbr.rel (%p238) target = $region12
      $region11: #{tpu_custom_call.1} parent=5 // pred_region
        %s242 = ssub.s32 %s21, 1
        // Predicated region
        $region13: #{tpu_custom_call.1} parent=11 // pred_check
          %p243 = pneg %p96
        $region14: #{tpu_custom_call.1} parent=11 // pred_check_branch
          %245 = sbr.rel (%p243) target = $region16
        $region15: #{tpu_custom_call.1} parent=11 // pred_region
          %s246 = smul.u32 32, %s33
          %s248 = ssub.s32 4096, 4096
          %249 = vsyncadd [#allocation7], %s248
          %s250 = sadd.s32 %s32, %s246
          %s251 = smul.addr %s250, 128
          %s252 = scalar_lea.hbm %s1, %s251
          %s253 = sshll.u32 [#allocation6], 4
          %s254 = int_to_ptr.vmem [resolvable:$true] %s253
          %259 = dma.hbm_to_vmem [thread:$0]  %s252, 4096, %s254, [#allocation7], 128, 128, 8
        $region16: #{tpu_custom_call.1} parent=11 // pred_fallthru
          _
        // Predicated region
        $region17: #{tpu_custom_call.1} parent=11 // pred_check
          %p260 = pneg %p122
        $region18: #{tpu_custom_call.1} parent=11 // pred_check_branch
          %262 = sbr.rel (%p260) target = $region20
        $region19: #{tpu_custom_call.1} parent=11 // pred_region
          %s263 = smul.u32 2, %s33
          %s265 = ssub.s32 32, 32
          %266 = vsyncadd [#allocation7], %s265
          %s267 = smul.addr %s263, 16
          %s268 = scalar_lea.hbm %s2, %s267
          %s270 = sshll.u32 [#allocation8], 4
          %s271 = int_to_ptr.vmem [resolvable:$true] %s270
          %273 = dma.hbm_to_vmem [thread:$0]  %s268, 32, %s271, [#allocation7]
        $region20: #{tpu_custom_call.1} parent=11 // pred_fallthru
          _
        // Predicated region
        $region21: #{tpu_custom_call.1} parent=11 // pred_check
          %p274 = pneg %p148
        $region22: #{tpu_custom_call.1} parent=11 // pred_check_branch
          %276 = sbr.rel (%p274) target = $region24
        $region23: #{tpu_custom_call.1} parent=11 // pred_region
          %s277 = smul.u32 2, %s33
          %s279 = ssub.s32 32, 32
          %280 = vsyncadd [#allocation10], %s279
          %s281 = smul.addr %s277, 16
          %s282 = scalar_lea.hbm %s3, %s281
          %s284 = sshll.u32 [#allocation9], 4
          %s285 = int_to_ptr.vmem [resolvable:$true] %s284
          %287 = dma.hbm_to_vmem [thread:$0]  %s282, 32, %s285, [#allocation10]
        $region24: #{tpu_custom_call.1} parent=11 // pred_fallthru
          _
        // Predicated region
        $region25: #{tpu_custom_call.1} parent=11 // pred_check
          %p288 = pneg %p174
        $region26: #{tpu_custom_call.1} parent=11 // pred_check_branch
          %290 = sbr.rel (%p288) target = $region28
        $region27: #{tpu_custom_call.1} parent=11 // pred_region
          %s292 = ssub.s32 16, 16
          %293 = vsyncadd [#allocation10], %s292
          %s294 = smul.addr %s32, 16
          %s295 = scalar_lea.hbm %s4, %s294
          %s297 = sshll.u32 [#allocation11], 4
          %s298 = int_to_ptr.vmem [resolvable:$true] %s297
          %300 = dma.hbm_to_vmem [thread:$0]  %s295, 16, %s298, [#allocation10]
        $region28: #{tpu_custom_call.1} parent=11 // pred_fallthru
          _
        // Predicated region
        $region29: #{tpu_custom_call.1} parent=11 // pred_check
          %p301 = pneg %p200
        $region30: #{tpu_custom_call.1} parent=11 // pred_check_branch
          %303 = sbr.rel (%p301) target = $region32
        $region31: #{tpu_custom_call.1} parent=11 // pred_region
          %s305 = ssub.s32 16, 16
          %306 = vsyncadd [#allocation13], %s305
          %s307 = smul.addr %s32, 16
          %s308 = scalar_lea.hbm %s5, %s307
          %s310 = sshll.u32 [#allocation12], 4
          %s311 = int_to_ptr.vmem [resolvable:$true] %s310
          %313 = dma.hbm_to_vmem [thread:$0]  %s308, 16, %s311, [#allocation13]
        $region32: #{tpu_custom_call.1} parent=11 // pred_fallthru
          _
      $region12: #{tpu_custom_call.1} parent=5 // pred_fallthru
        _
      %p314 = scmp.lt.s32.totalorder %s21, 64
      // Predicated region
      $region33: #{tpu_custom_call.1} parent=5 // pred_check
        %p315 = pneg %p314
      $region34: #{tpu_custom_call.1} parent=5 // pred_check_branch
        %317 = sbr.rel (%p315) target = $region36
      $region35: #{tpu_custom_call.1} parent=5 // pred_region
        // Predicated region
        $region37: #{tpu_custom_call.1} parent=35 // pred_check
          %p318 = pneg %p62
        $region38: #{tpu_custom_call.1} parent=35 // pred_check_branch
          %320 = sbr.rel (%p318) target = $region40
        $region39: #{tpu_custom_call.1} parent=35 // pred_region
          %s321 = sand.u32 %s52, 1
          %s322 = scalar_lea.sflag [#allocation4], %s321
          %s323 = sand.u32 %s52, 1
          %s324 = smul.addr %s323, 512
          %s325 = scalar_lea.vmem [#allocation3], %s324
          %s326 = smul.u32 32, %s28
          %s327 = smul.u32 2, %s30
          %s329 = ssub.s32 8192, 8192
          %330 = vsyncadd %s322, %s329
          %s331 = smul.addr %s326, 2
          %s332 = sadd.s32 %s327, %s331
          %s333 = smul.addr %s332, 128
          %s334 = scalar_lea.hbm %s0, %s333
          %s335 = sshll.u32 %s325, 4
          %s336 = int_to_ptr.vmem [resolvable:$true] %s335
          %341 = dma.hbm_to_vmem [thread:$0]  %s334, 8192, %s336, %s322, 256, 256, 16
        $region40: #{tpu_custom_call.1} parent=35 // pred_fallthru
          _
      $region36: #{tpu_custom_call.1} parent=5 // pred_fallthru
        _
      %p342 = scmp.le.s32.totalorder 1, %s21
      %p343 = scmp.lt.s32.totalorder %s21, 65
      %p344 = pnand %p342, %p343
      %p345 = pneg %p344
      // Predicated region
      $region41: #{tpu_custom_call.1} parent=5 // pred_check
        _
      $region42: #{tpu_custom_call.1} parent=5 // pred_check_branch
        %347 = sbr.rel (%p344) target = $region44
      $region43: #{tpu_custom_call.1} parent=5 // pred_region
        %s348 = ssub.s32 %s21, 1
        %s349 = sand.u32 %s55, 1
        %s350 = scalar_lea.sflag [#allocation4], %s349
        %s351 = sand.u32 %s55, 1
        %s352 = smul.addr %s351, 512
        %s353 = scalar_lea.vmem [#allocation3], %s352
        // Predicated region
        $region45: #{tpu_custom_call.1} parent=43 // pred_check
          %p354 = pneg %p68
        $region46: #{tpu_custom_call.1} parent=43 // pred_check_branch
          %356 = sbr.rel (%p354) target = $region48
        $region47: #{tpu_custom_call.1} parent=43 // pred_region
          %357 = dma.done %s350, 8192
        $region48: #{tpu_custom_call.1} parent=43 // pred_fallthru
          _
        // Predicated region
        $region49: #{tpu_custom_call.1} parent=43 // pred_check
          %p358 = pneg %p96
        $region50: #{tpu_custom_call.1} parent=43 // pred_check_branch
          %360 = sbr.rel (%p358) target = $region52
        $region51: #{tpu_custom_call.1} parent=43 // pred_region
          %361 = dma.done [#allocation7], 4096
        $region52: #{tpu_custom_call.1} parent=43 // pred_fallthru
          _
        // Predicated region
        $region53: #{tpu_custom_call.1} parent=43 // pred_check
          %p362 = pneg %p122
        $region54: #{tpu_custom_call.1} parent=43 // pred_check_branch
          %364 = sbr.rel (%p362) target = $region56
        $region55: #{tpu_custom_call.1} parent=43 // pred_region
          %365 = dma.done [#allocation7], 32
        $region56: #{tpu_custom_call.1} parent=43 // pred_fallthru
          _
        // Predicated region
        $region57: #{tpu_custom_call.1} parent=43 // pred_check
          %p366 = pneg %p148
        $region58: #{tpu_custom_call.1} parent=43 // pred_check_branch
          %368 = sbr.rel (%p366) target = $region60
        $region59: #{tpu_custom_call.1} parent=43 // pred_region
          %369 = dma.done [#allocation10], 32
        $region60: #{tpu_custom_call.1} parent=43 // pred_fallthru
          _
        // Predicated region
        $region61: #{tpu_custom_call.1} parent=43 // pred_check
          %p370 = pneg %p174
        $region62: #{tpu_custom_call.1} parent=43 // pred_check_branch
          %372 = sbr.rel (%p370) target = $region64
        $region63: #{tpu_custom_call.1} parent=43 // pred_region
          %373 = dma.done [#allocation10], 16
        $region64: #{tpu_custom_call.1} parent=43 // pred_fallthru
          _
        // Predicated region
        $region65: #{tpu_custom_call.1} parent=43 // pred_check
          %p374 = pneg %p200
        $region66: #{tpu_custom_call.1} parent=43 // pred_check_branch
          %376 = sbr.rel (%p374) target = $region68
        $region67: #{tpu_custom_call.1} parent=43 // pred_region
          %377 = dma.done [#allocation13], 16
        $region68: #{tpu_custom_call.1} parent=43 // pred_fallthru
          _
        %s378 = sand.u32 %s55, 1
        %s379 = scalar_lea.sflag [#allocation4], %s378
        %s380 = sand.u32 %s55, 1
        %s381 = smul.addr %s380, 512
        %s382 = scalar_lea.vmem [#allocation3], %s381
        %p383 = pneg %p68
        %p384 = pneg %p65
        %p385 = pneg %p96
        %p386 = pneg %p93
        %p387 = pneg %p122
        %p388 = pneg %p119
        %p389 = pneg %p148
        %p390 = pneg %p145
        %p391 = pneg %p174
        %p392 = pneg %p171
        %p393 = pneg %p200
        %p394 = pneg %p197
        %p395 = pneg %p228
        %p396 = pneg %p225
        %s397 = sand.u32 %s215, 1
        %s398 = scalar_lea.sflag [#allocation5], %s397
        %s399 = sand.u32 %s215, 1
        %s400 = smul.addr %s399, 256
        %s401 = scalar_lea.vmem [#allocation14], %s400
        %s402 = smul.u32 32, %s31
        %s403 = smul.u32 2, %s33
        %s404 = smul.u32 32, %s33
        %s405 = smul.u32 2, %s33
        %s406 = smul.u32 2, %s33
        %s407 = smul.u32 32, %s31
        %p408 = scmp.eq.s32.totalorder %s33, 0
        // Predicated region
        $region69: #{tpu_custom_call.1} parent=43 // pred_check
          %p409 = pneg %p408
        $region70: #{tpu_custom_call.1} parent=43 // pred_check_branch
          %411 = sbr.rel (%p409) target = $region72
        $region71: #{tpu_custom_call.1} parent=43 // pred_region
          %412 = vst [vmem:[#allocation2] sm:$0xff] 0.0
          %413 = vst [vmem:[#allocation2 + $0x8] sm:$0xff] 0.0
          %414 = vst [vmem:[#allocation2 + $0x10] sm:$0xff] 0.0
          %415 = vst [vmem:[#allocation2 + $0x18] sm:$0xff] 0.0
          %416 = vst [vmem:[#allocation2 + $0x20] sm:$0xff] 0.0
          %417 = vst [vmem:[#allocation2 + $0x28] sm:$0xff] 0.0
          %418 = vst [vmem:[#allocation2 + $0x30] sm:$0xff] 0.0
          %419 = vst [vmem:[#allocation2 + $0x38] sm:$0xff] 0.0
          %420 = vst [vmem:[#allocation2 + $0x40] sm:$0xff] 0.0
          %421 = vst [vmem:[#allocation2 + $0x48] sm:$0xff] 0.0
          %422 = vst [vmem:[#allocation2 + $0x50] sm:$0xff] 0.0
          %423 = vst [vmem:[#allocation2 + $0x58] sm:$0xff] 0.0
          %424 = vst [vmem:[#allocation2 + $0x60] sm:$0xff] 0.0
          %425 = vst [vmem:[#allocation2 + $0x68] sm:$0xff] 0.0
          %426 = vst [vmem:[#allocation2 + $0x70] sm:$0xff] 0.0
          %427 = vst [vmem:[#allocation2 + $0x78] sm:$0xff] 0.0
          %428 = vst [vmem:[#allocation2 + $0x80] sm:$0xff] 0.0
          %429 = vst [vmem:[#allocation2 + $0x88] sm:$0xff] 0.0
          %430 = vst [vmem:[#allocation2 + $0x90] sm:$0xff] 0.0
          %431 = vst [vmem:[#allocation2 + $0x98] sm:$0xff] 0.0
          %432 = vst [vmem:[#allocation2 + $0xa0] sm:$0xff] 0.0
          %433 = vst [vmem:[#allocation2 + $0xa8] sm:$0xff] 0.0
          %434 = vst [vmem:[#allocation2 + $0xb0] sm:$0xff] 0.0
          %435 = vst [vmem:[#allocation2 + $0xb8] sm:$0xff] 0.0
          %436 = vst [vmem:[#allocation2 + $0xc0] sm:$0xff] 0.0
          %437 = vst [vmem:[#allocation2 + $0xc8] sm:$0xff] 0.0
          %438 = vst [vmem:[#allocation2 + $0xd0] sm:$0xff] 0.0
          %439 = vst [vmem:[#allocation2 + $0xd8] sm:$0xff] 0.0
          %440 = vst [vmem:[#allocation2 + $0xe0] sm:$0xff] 0.0
          %441 = vst [vmem:[#allocation2 + $0xe8] sm:$0xff] 0.0
          %442 = vst [vmem:[#allocation2 + $0xf0] sm:$0xff] 0.0
          %443 = vst [vmem:[#allocation2 + $0xf8] sm:$0xff] 0.0
        $region72: #{tpu_custom_call.1} parent=43 // pred_fallthru
          _
        %v444 = vld [vmem:[%s353] sm:$0xff]
        %v445 = vld [vmem:[%s353 + $0x8] sm:$0xff]
        %v446 = vld [vmem:[%s353 + $0x10] sm:$0xff]
        %v447 = vld [vmem:[%s353 + $0x18] sm:$0xff]
        %v448 = vld [vmem:[%s353 + $0x20] sm:$0xff]
        %v449 = vld [vmem:[%s353 + $0x28] sm:$0xff]
        %v450 = vld [vmem:[%s353 + $0x30] sm:$0xff]
        %v451 = vld [vmem:[%s353 + $0x38] sm:$0xff]
        %v452 = vld [vmem:[%s353 + $0x40] sm:$0xff]
        %v453 = vld [vmem:[%s353 + $0x48] sm:$0xff]
        %v454 = vld [vmem:[%s353 + $0x50] sm:$0xff]
        %v455 = vld [vmem:[%s353 + $0x58] sm:$0xff]
        %v456 = vld [vmem:[%s353 + $0x60] sm:$0xff]
        %v457 = vld [vmem:[%s353 + $0x68] sm:$0xff]
        %v458 = vld [vmem:[%s353 + $0x70] sm:$0xff]
        %v459 = vld [vmem:[%s353 + $0x78] sm:$0xff]
        %v460 = vld [vmem:[%s353 + $0x80] sm:$0xff]
        %v461 = vld [vmem:[%s353 + $0x88] sm:$0xff]
        %v462 = vld [vmem:[%s353 + $0x90] sm:$0xff]
        %v463 = vld [vmem:[%s353 + $0x98] sm:$0xff]
        %v464 = vld [vmem:[%s353 + $0xa0] sm:$0xff]
        %v465 = vld [vmem:[%s353 + $0xa8] sm:$0xff]
        %v466 = vld [vmem:[%s353 + $0xb0] sm:$0xff]
        %v467 = vld [vmem:[%s353 + $0xb8] sm:$0xff]
        %v468 = vld [vmem:[%s353 + $0xc0] sm:$0xff]
        %v469 = vld [vmem:[%s353 + $0xc8] sm:$0xff]
        %v470 = vld [vmem:[%s353 + $0xd0] sm:$0xff]
        %v471 = vld [vmem:[%s353 + $0xd8] sm:$0xff]
        %v472 = vld [vmem:[%s353 + $0xe0] sm:$0xff]
        %v473 = vld [vmem:[%s353 + $0xe8] sm:$0xff]
        %v474 = vld [vmem:[%s353 + $0xf0] sm:$0xff]
        %v475 = vld [vmem:[%s353 + $0xf8] sm:$0xff]
        %v476 = vld [vmem:[%s353 + $0x100] sm:$0xff]
        %v477 = vld [vmem:[%s353 + $0x108] sm:$0xff]
        %v478 = vld [vmem:[%s353 + $0x110] sm:$0xff]
        %v479 = vld [vmem:[%s353 + $0x118] sm:$0xff]
        %v480 = vld [vmem:[%s353 + $0x120] sm:$0xff]
        %v481 = vld [vmem:[%s353 + $0x128] sm:$0xff]
        %v482 = vld [vmem:[%s353 + $0x130] sm:$0xff]
        %v483 = vld [vmem:[%s353 + $0x138] sm:$0xff]
        %v484 = vld [vmem:[%s353 + $0x140] sm:$0xff]
        %v485 = vld [vmem:[%s353 + $0x148] sm:$0xff]
        %v486 = vld [vmem:[%s353 + $0x150] sm:$0xff]
        %v487 = vld [vmem:[%s353 + $0x158] sm:$0xff]
        %v488 = vld [vmem:[%s353 + $0x160] sm:$0xff]
        %v489 = vld [vmem:[%s353 + $0x168] sm:$0xff]
        %v490 = vld [vmem:[%s353 + $0x170] sm:$0xff]
        %v491 = vld [vmem:[%s353 + $0x178] sm:$0xff]
        %v492 = vld [vmem:[%s353 + $0x180] sm:$0xff]
        %v493 = vld [vmem:[%s353 + $0x188] sm:$0xff]
        %v494 = vld [vmem:[%s353 + $0x190] sm:$0xff]
        %v495 = vld [vmem:[%s353 + $0x198] sm:$0xff]
        %v496 = vld [vmem:[%s353 + $0x1a0] sm:$0xff]
        %v497 = vld [vmem:[%s353 + $0x1a8] sm:$0xff]
        %v498 = vld [vmem:[%s353 + $0x1b0] sm:$0xff]
        %v499 = vld [vmem:[%s353 + $0x1b8] sm:$0xff]
        %v500 = vld [vmem:[%s353 + $0x1c0] sm:$0xff]
        %v501 = vld [vmem:[%s353 + $0x1c8] sm:$0xff]
        %v502 = vld [vmem:[%s353 + $0x1d0] sm:$0xff]
        %v503 = vld [vmem:[%s353 + $0x1d8] sm:$0xff]
        %v504 = vld [vmem:[%s353 + $0x1e0] sm:$0xff]
        %v505 = vld [vmem:[%s353 + $0x1e8] sm:$0xff]
        %v506 = vld [vmem:[%s353 + $0x1f0] sm:$0xff]
        %v507 = vld [vmem:[%s353 + $0x1f8] sm:$0xff]
        %v508 = vld [vmem:[#allocation2] sm:$0xff]
        %v509 = vld [vmem:[#allocation2 + $0x8] sm:$0xff]
        %v510 = vld [vmem:[#allocation2 + $0x10] sm:$0xff]
        %v511 = vld [vmem:[#allocation2 + $0x18] sm:$0xff]
        %v512 = vld [vmem:[#allocation2 + $0x20] sm:$0xff]
        %v513 = vld [vmem:[#allocation2 + $0x28] sm:$0xff]
        %v514 = vld [vmem:[#allocation2 + $0x30] sm:$0xff]
        %v515 = vld [vmem:[#allocation2 + $0x38] sm:$0xff]
        %v516 = vld [vmem:[#allocation2 + $0x40] sm:$0xff]
        %v517 = vld [vmem:[#allocation2 + $0x48] sm:$0xff]
        %v518 = vld [vmem:[#allocation2 + $0x50] sm:$0xff]
        %v519 = vld [vmem:[#allocation2 + $0x58] sm:$0xff]
        %v520 = vld [vmem:[#allocation2 + $0x60] sm:$0xff]
        %v521 = vld [vmem:[#allocation2 + $0x68] sm:$0xff]
        %v522 = vld [vmem:[#allocation2 + $0x70] sm:$0xff]
        %v523 = vld [vmem:[#allocation2 + $0x78] sm:$0xff]
        %v524 = vld [vmem:[#allocation2 + $0x80] sm:$0xff]
        %v525 = vld [vmem:[#allocation2 + $0x88] sm:$0xff]
        %v526 = vld [vmem:[#allocation2 + $0x90] sm:$0xff]
        %v527 = vld [vmem:[#allocation2 + $0x98] sm:$0xff]
        %v528 = vld [vmem:[#allocation2 + $0xa0] sm:$0xff]
        %v529 = vld [vmem:[#allocation2 + $0xa8] sm:$0xff]
        %v530 = vld [vmem:[#allocation2 + $0xb0] sm:$0xff]
        %v531 = vld [vmem:[#allocation2 + $0xb8] sm:$0xff]
        %v532 = vld [vmem:[#allocation2 + $0xc0] sm:$0xff]
        %v533 = vld [vmem:[#allocation2 + $0xc8] sm:$0xff]
        %v534 = vld [vmem:[#allocation2 + $0xd0] sm:$0xff]
        %v535 = vld [vmem:[#allocation2 + $0xd8] sm:$0xff]
        %v536 = vld [vmem:[#allocation2 + $0xe0] sm:$0xff]
        %v537 = vld [vmem:[#allocation2 + $0xe8] sm:$0xff]
        %v538 = vld [vmem:[#allocation2 + $0xf0] sm:$0xff]
        %v539 = vld [vmem:[#allocation2 + $0xf8] sm:$0xff]
        %v540 = vld [vmem:[#allocation6] sm:$0xff]
        %v541 = vld [vmem:[#allocation6 + $0x8] sm:$0xff]
        %v542 = vld [vmem:[#allocation6 + $0x10] sm:$0xff]
        %v543 = vld [vmem:[#allocation6 + $0x18] sm:$0xff]
        %v544 = vld [vmem:[#allocation6 + $0x20] sm:$0xff]
        %v545 = vld [vmem:[#allocation6 + $0x28] sm:$0xff]
        %v546 = vld [vmem:[#allocation6 + $0x30] sm:$0xff]
        %v547 = vld [vmem:[#allocation6 + $0x38] sm:$0xff]
        %v548 = vld [vmem:[#allocation6 + $0x40] sm:$0xff]
        %v549 = vld [vmem:[#allocation6 + $0x48] sm:$0xff]
        %v550 = vld [vmem:[#allocation6 + $0x50] sm:$0xff]
        %v551 = vld [vmem:[#allocation6 + $0x58] sm:$0xff]
        %v552 = vld [vmem:[#allocation6 + $0x60] sm:$0xff]
        %v553 = vld [vmem:[#allocation6 + $0x68] sm:$0xff]
        %v554 = vld [vmem:[#allocation6 + $0x70] sm:$0xff]
        %v555 = vld [vmem:[#allocation6 + $0x78] sm:$0xff]
        %v556 = vld [vmem:[#allocation6 + $0x80] sm:$0xff]
        %v557 = vld [vmem:[#allocation6 + $0x88] sm:$0xff]
        %v558 = vld [vmem:[#allocation6 + $0x90] sm:$0xff]
        %v559 = vld [vmem:[#allocation6 + $0x98] sm:$0xff]
        %v560 = vld [vmem:[#allocation6 + $0xa0] sm:$0xff]
        %v561 = vld [vmem:[#allocation6 + $0xa8] sm:$0xff]
        %v562 = vld [vmem:[#allocation6 + $0xb0] sm:$0xff]
        %v563 = vld [vmem:[#allocation6 + $0xb8] sm:$0xff]
        %v564 = vld [vmem:[#allocation6 + $0xc0] sm:$0xff]
        %v565 = vld [vmem:[#allocation6 + $0xc8] sm:$0xff]
        %v566 = vld [vmem:[#allocation6 + $0xd0] sm:$0xff]
        %v567 = vld [vmem:[#allocation6 + $0xd8] sm:$0xff]
        %v568 = vld [vmem:[#allocation6 + $0xe0] sm:$0xff]
        %v569 = vld [vmem:[#allocation6 + $0xe8] sm:$0xff]
        %v570 = vld [vmem:[#allocation6 + $0xf0] sm:$0xff]
        %v571 = vld [vmem:[#allocation6 + $0xf8] sm:$0xff]
        %572 = vmatprep.subr.mxu0 0.0
        %573 = vmatpush1.msra.mxu0 %v555
        %574 = vmatprep.subr.mxu0 0.0
        %575 = vmatpush1.msra.mxu0 %v554
        %576 = vmatprep.subr.mxu0 0.0
        %577 = vmatpush1.msra.mxu0 %v553
        %578 = vmatprep.subr.mxu0 0.0
        %579 = vmatpush1.msra.mxu0 %v552
        %580 = vmatprep.subr.mxu0 0.0
        %581 = vmatpush1.msra.mxu0 %v551
        %582 = vmatprep.subr.mxu0 0.0
        %583 = vmatpush1.msra.mxu0 %v550
        %584 = vmatprep.subr.mxu0 0.0
        %585 = vmatpush1.msra.mxu0 %v549
        %586 = vmatprep.subr.mxu0 0.0
        %587 = vmatpush1.msra.mxu0 %v548
        %588 = vmatprep.subr.mxu0 0.0
        %589 = vmatpush1.msra.mxu0 %v547
        %590 = vmatprep.subr.mxu0 0.0
        %591 = vmatpush1.msra.mxu0 %v546
        %592 = vmatprep.subr.mxu0 0.0
        %593 = vmatpush1.msra.mxu0 %v545
        %594 = vmatprep.subr.mxu0 0.0
        %595 = vmatpush1.msra.mxu0 %v544
        %596 = vmatprep.subr.mxu0 0.0
        %597 = vmatpush1.msra.mxu0 %v543
        %598 = vmatprep.subr.mxu0 0.0
        %599 = vmatpush1.msra.mxu0 %v542
        %600 = vmatprep.subr.mxu0 0.0
        %601 = vmatpush1.msra.mxu0 %v541
        %602 = vmatprep.subr.mxu0 0.0
        %603 = vmatpush1.msra.mxu0 %v540
        %604 = vmatprep.subr.mxu0 0.0
        %605 = vmatpush2.msra.mxu0 %v571
        %606 = vmatprep.subr.mxu0 0.0
        %607 = vmatpush2.msra.mxu0 %v570
        %608 = vmatprep.subr.mxu0 0.0
        %609 = vmatpush2.msra.mxu0 %v569
        %610 = vmatprep.subr.mxu0 0.0
        %611 = vmatpush2.msra.mxu0 %v568
        %612 = vmatprep.subr.mxu0 0.0
        %613 = vmatpush2.msra.mxu0 %v567
        %614 = vmatprep.subr.mxu0 0.0
        %615 = vmatpush2.msra.mxu0 %v566
        %616 = vmatprep.subr.mxu0 0.0
        %617 = vmatpush2.msra.mxu0 %v565
        %618 = vmatprep.subr.mxu0 0.0
        %619 = vmatpush2.msra.mxu0 %v564
        %620 = vmatprep.subr.mxu0 0.0
        %621 = vmatpush2.msra.mxu0 %v563
        %622 = vmatprep.subr.mxu0 0.0
        %623 = vmatpush2.msra.mxu0 %v562
        %624 = vmatprep.subr.mxu0 0.0
        %625 = vmatpush2.msra.mxu0 %v561
        %626 = vmatprep.subr.mxu0 0.0
        %627 = vmatpush2.msra.mxu0 %v560
        %628 = vmatprep.subr.mxu0 0.0
        %629 = vmatpush2.msra.mxu0 %v559
        %630 = vmatprep.subr.mxu0 0.0
        %631 = vmatpush2.msra.mxu0 %v558
        %632 = vmatprep.subr.mxu0 0.0
        %633 = vmatpush2.msra.mxu0 %v557
        %634 = vmatprep.subr.mxu0 0.0
        %635 = vmatpush2.msra.mxu0 %v556
        %636 = vmatprep.mubr.f32.mxu0 %v445
        %637 = vmatmul.mubr.f32.gmra.mxu0 %v444
        %v638 = vpop.f32.mrf.mxu0
        %v639 = vadd.f32 0.0, %v638
        %v640 = vpop.f32.mrf.mxu0
        %641 = vmatprep.mubr.f32.mxu0 %v447
        %642 = vmatmul.mubr.f32.gmra.mxu0 %v446
        %v643 = vpop.f32.mrf.mxu0
        %v644 = vadd.f32 0.0, %v643
        %v645 = vpop.f32.mrf.mxu0
        %646 = vmatprep.mubr.f32.mxu0 %v449
        %647 = vmatmul.mubr.f32.gmra.mxu0 %v448
        %v648 = vpop.f32.mrf.mxu0
        %v649 = vadd.f32 0.0, %v648
        %v650 = vpop.f32.mrf.mxu0
        %651 = vmatprep.mubr.f32.mxu0 %v451
        %652 = vmatmul.mubr.f32.gmra.mxu0 %v450
        %v653 = vpop.f32.mrf.mxu0
        %v654 = vadd.f32 0.0, %v653
        %v655 = vpop.f32.mrf.mxu0
        %656 = vmatprep.mubr.f32.mxu0 %v453
        %657 = vmatmul.mubr.f32.gmra.mxu0 %v452
        %v658 = vpop.f32.mrf.mxu0
        %v659 = vadd.f32 0.0, %v658
        %v660 = vpop.f32.mrf.mxu0
        %661 = vmatprep.mubr.f32.mxu0 %v455
        %662 = vmatmul.mubr.f32.gmra.mxu0 %v454
        %v663 = vpop.f32.mrf.mxu0
        %v664 = vadd.f32 0.0, %v663
        %v665 = vpop.f32.mrf.mxu0
        %666 = vmatprep.mubr.f32.mxu0 %v457
        %667 = vmatmul.mubr.f32.gmra.mxu0 %v456
        %v668 = vpop.f32.mrf.mxu0
        %v669 = vadd.f32 0.0, %v668
        %v670 = vpop.f32.mrf.mxu0
        %671 = vmatprep.mubr.f32.mxu0 %v459
        %672 = vmatmul.mubr.f32.gmra.mxu0 %v458
        %v673 = vpop.f32.mrf.mxu0
        %v674 = vadd.f32 0.0, %v673
        %v675 = vpop.f32.mrf.mxu0
        %676 = vmatprep.mubr.f32.mxu0 %v461
        %677 = vmatmul.mubr.f32.gmra.mxu0 %v460
        %v678 = vpop.f32.mrf.mxu0
        %v679 = vadd.f32 0.0, %v678
        %v680 = vpop.f32.mrf.mxu0
        %681 = vmatprep.mubr.f32.mxu0 %v463
        %682 = vmatmul.mubr.f32.gmra.mxu0 %v462
        %v683 = vpop.f32.mrf.mxu0
        %v684 = vadd.f32 0.0, %v683
        %v685 = vpop.f32.mrf.mxu0
        %686 = vmatprep.mubr.f32.mxu0 %v465
        %687 = vmatmul.mubr.f32.gmra.mxu0 %v464
        %v688 = vpop.f32.mrf.mxu0
        %v689 = vadd.f32 0.0, %v688
        %v690 = vpop.f32.mrf.mxu0
        %691 = vmatprep.mubr.f32.mxu0 %v467
        %692 = vmatmul.mubr.f32.gmra.mxu0 %v466
        %v693 = vpop.f32.mrf.mxu0
        %v694 = vadd.f32 0.0, %v693
        %v695 = vpop.f32.mrf.mxu0
        %696 = vmatprep.mubr.f32.mxu0 %v469
        %697 = vmatmul.mubr.f32.gmra.mxu0 %v468
        %v698 = vpop.f32.mrf.mxu0
        %v699 = vadd.f32 0.0, %v698
        %v700 = vpop.f32.mrf.mxu0
        %701 = vmatprep.mubr.f32.mxu0 %v471
        %702 = vmatmul.mubr.f32.gmra.mxu0 %v470
        %v703 = vpop.f32.mrf.mxu0
        %v704 = vadd.f32 0.0, %v703
        %v705 = vpop.f32.mrf.mxu0
        %706 = vmatprep.mubr.f32.mxu0 %v473
        %707 = vmatmul.mubr.f32.gmra.mxu0 %v472
        %v708 = vpop.f32.mrf.mxu0
        %v709 = vadd.f32 0.0, %v708
        %v710 = vpop.f32.mrf.mxu0
        %711 = vmatprep.mubr.f32.mxu0 %v475
        %712 = vmatmul.mubr.f32.gmra.mxu0 %v474
        %v713 = vpop.f32.mrf.mxu0
        %v714 = vadd.f32 0.0, %v713
        %v715 = vpop.f32.mrf.mxu0
        %716 = vmatprep.mubr.f32.mxu0 %v477
        %717 = vmatmul.mubr.f32.gmra.mxu0 %v476
        %v718 = vpop.f32.mrf.mxu0
        %v719 = vadd.f32 0.0, %v718
        %v720 = vpop.f32.mrf.mxu0
        %721 = vmatprep.mubr.f32.mxu0 %v479
        %722 = vmatmul.mubr.f32.gmra.mxu0 %v478
        %v723 = vpop.f32.mrf.mxu0
        %v724 = vadd.f32 0.0, %v723
        %v725 = vpop.f32.mrf.mxu0
        %726 = vmatprep.mubr.f32.mxu0 %v481
        %727 = vmatmul.mubr.f32.gmra.mxu0 %v480
        %v728 = vpop.f32.mrf.mxu0
        %v729 = vadd.f32 0.0, %v728
        %v730 = vpop.f32.mrf.mxu0
        %731 = vmatprep.mubr.f32.mxu0 %v483
        %732 = vmatmul.mubr.f32.gmra.mxu0 %v482
        %v733 = vpop.f32.mrf.mxu0
        %v734 = vadd.f32 0.0, %v733
        %v735 = vpop.f32.mrf.mxu0
        %736 = vmatprep.mubr.f32.mxu0 %v485
        %737 = vmatmul.mubr.f32.gmra.mxu0 %v484
        %v738 = vpop.f32.mrf.mxu0
        %v739 = vadd.f32 0.0, %v738
        %v740 = vpop.f32.mrf.mxu0
        %741 = vmatprep.mubr.f32.mxu0 %v487
        %742 = vmatmul.mubr.f32.gmra.mxu0 %v486
        %v743 = vpop.f32.mrf.mxu0
        %v744 = vadd.f32 0.0, %v743
        %v745 = vpop.f32.mrf.mxu0
        %746 = vmatprep.mubr.f32.mxu0 %v489
        %747 = vmatmul.mubr.f32.gmra.mxu0 %v488
        %v748 = vpop.f32.mrf.mxu0
        %v749 = vadd.f32 0.0, %v748
        %v750 = vpop.f32.mrf.mxu0
        %751 = vmatprep.mubr.f32.mxu0 %v491
        %752 = vmatmul.mubr.f32.gmra.mxu0 %v490
        %v753 = vpop.f32.mrf.mxu0
        %v754 = vadd.f32 0.0, %v753
        %v755 = vpop.f32.mrf.mxu0
        %756 = vmatprep.mubr.f32.mxu0 %v493
        %757 = vmatmul.mubr.f32.gmra.mxu0 %v492
        %v758 = vpop.f32.mrf.mxu0
        %v759 = vadd.f32 0.0, %v758
        %v760 = vpop.f32.mrf.mxu0
        %761 = vmatprep.mubr.f32.mxu0 %v495
        %762 = vmatmul.mubr.f32.gmra.mxu0 %v494
        %v763 = vpop.f32.mrf.mxu0
        %v764 = vadd.f32 0.0, %v763
        %v765 = vpop.f32.mrf.mxu0
        %766 = vmatprep.mubr.f32.mxu0 %v497
        %767 = vmatmul.mubr.f32.gmra.mxu0 %v496
        %v768 = vpop.f32.mrf.mxu0
        %v769 = vadd.f32 0.0, %v768
        %v770 = vpop.f32.mrf.mxu0
        %771 = vmatprep.mubr.f32.mxu0 %v499
        %772 = vmatmul.mubr.f32.gmra.mxu0 %v498
        %v773 = vpop.f32.mrf.mxu0
        %v774 = vadd.f32 0.0, %v773
        %v775 = vpop.f32.mrf.mxu0
        %776 = vmatprep.mubr.f32.mxu0 %v501
        %777 = vmatmul.mubr.f32.gmra.mxu0 %v500
        %v778 = vpop.f32.mrf.mxu0
        %v779 = vadd.f32 0.0, %v778
        %v780 = vpop.f32.mrf.mxu0
        %781 = vmatprep.mubr.f32.mxu0 %v503
        %782 = vmatmul.mubr.f32.gmra.mxu0 %v502
        %v783 = vpop.f32.mrf.mxu0
        %v784 = vadd.f32 0.0, %v783
        %v785 = vpop.f32.mrf.mxu0
        %786 = vmatprep.mubr.f32.mxu0 %v505
        %787 = vmatmul.mubr.f32.gmra.mxu0 %v504
        %v788 = vpop.f32.mrf.mxu0
        %v789 = vadd.f32 0.0, %v788
        %v790 = vpop.f32.mrf.mxu0
        %791 = vmatprep.mubr.f32.mxu0 %v507
        %792 = vmatmul.mubr.f32.gmra.mxu0 %v506
        %v793 = vpop.f32.mrf.mxu0
        %v794 = vadd.f32 0.0, %v793
        %v795 = vpop.f32.mrf.mxu0
        %796 = vdwg.mxu0
        %v797 = vadd.f32 %v508, %v639
        %v798 = vadd.f32 %v509, %v644
        %v799 = vadd.f32 %v510, %v649
        %v800 = vadd.f32 %v511, %v654
        %v801 = vadd.f32 %v512, %v659
        %v802 = vadd.f32 %v513, %v664
        %v803 = vadd.f32 %v514, %v669
        %v804 = vadd.f32 %v515, %v674
        %v805 = vadd.f32 %v516, %v679
        %v806 = vadd.f32 %v517, %v684
        %v807 = vadd.f32 %v518, %v689
        %v808 = vadd.f32 %v519, %v694
        %v809 = vadd.f32 %v520, %v699
        %v810 = vadd.f32 %v521, %v704
        %v811 = vadd.f32 %v522, %v709
        %v812 = vadd.f32 %v523, %v714
        %v813 = vadd.f32 %v524, %v719
        %v814 = vadd.f32 %v525, %v724
        %v815 = vadd.f32 %v526, %v729
        %v816 = vadd.f32 %v527, %v734
        %v817 = vadd.f32 %v528, %v739
        %v818 = vadd.f32 %v529, %v744
        %v819 = vadd.f32 %v530, %v749
        %v820 = vadd.f32 %v531, %v754
        %v821 = vadd.f32 %v532, %v759
        %v822 = vadd.f32 %v533, %v764
        %v823 = vadd.f32 %v534, %v769
        %v824 = vadd.f32 %v535, %v774
        %v825 = vadd.f32 %v536, %v779
        %v826 = vadd.f32 %v537, %v784
        %v827 = vadd.f32 %v538, %v789
        %v828 = vadd.f32 %v539, %v794
        %829 = vst [vmem:[#allocation2] sm:$0xff] %v797
        %830 = vst [vmem:[#allocation2 + $0x8] sm:$0xff] %v798
        %831 = vst [vmem:[#allocation2 + $0x10] sm:$0xff] %v799
        %832 = vst [vmem:[#allocation2 + $0x18] sm:$0xff] %v800
        %833 = vst [vmem:[#allocation2 + $0x20] sm:$0xff] %v801
        %834 = vst [vmem:[#allocation2 + $0x28] sm:$0xff] %v802
        %835 = vst [vmem:[#allocation2 + $0x30] sm:$0xff] %v803
        %836 = vst [vmem:[#allocation2 + $0x38] sm:$0xff] %v804
        %837 = vst [vmem:[#allocation2 + $0x40] sm:$0xff] %v805
        %838 = vst [vmem:[#allocation2 + $0x48] sm:$0xff] %v806
        %839 = vst [vmem:[#allocation2 + $0x50] sm:$0xff] %v807
        %840 = vst [vmem:[#allocation2 + $0x58] sm:$0xff] %v808
        %841 = vst [vmem:[#allocation2 + $0x60] sm:$0xff] %v809
        %842 = vst [vmem:[#allocation2 + $0x68] sm:$0xff] %v810
        %843 = vst [vmem:[#allocation2 + $0x70] sm:$0xff] %v811
        %844 = vst [vmem:[#allocation2 + $0x78] sm:$0xff] %v812
        %845 = vst [vmem:[#allocation2 + $0x80] sm:$0xff] %v813
        %846 = vst [vmem:[#allocation2 + $0x88] sm:$0xff] %v814
        %847 = vst [vmem:[#allocation2 + $0x90] sm:$0xff] %v815
        %848 = vst [vmem:[#allocation2 + $0x98] sm:$0xff] %v816
        %849 = vst [vmem:[#allocation2 + $0xa0] sm:$0xff] %v817
        %850 = vst [vmem:[#allocation2 + $0xa8] sm:$0xff] %v818
        %851 = vst [vmem:[#allocation2 + $0xb0] sm:$0xff] %v819
        %852 = vst [vmem:[#allocation2 + $0xb8] sm:$0xff] %v820
        %853 = vst [vmem:[#allocation2 + $0xc0] sm:$0xff] %v821
        %854 = vst [vmem:[#allocation2 + $0xc8] sm:$0xff] %v822
        %855 = vst [vmem:[#allocation2 + $0xd0] sm:$0xff] %v823
        %856 = vst [vmem:[#allocation2 + $0xd8] sm:$0xff] %v824
        %857 = vst [vmem:[#allocation2 + $0xe0] sm:$0xff] %v825
        %858 = vst [vmem:[#allocation2 + $0xe8] sm:$0xff] %v826
        %859 = vst [vmem:[#allocation2 + $0xf0] sm:$0xff] %v827
        %860 = vst [vmem:[#allocation2 + $0xf8] sm:$0xff] %v828
        // Predicated region
        $region73: #{tpu_custom_call.1} parent=43 // pred_check
          %p861 = pneg %p408
        $region74: #{tpu_custom_call.1} parent=43 // pred_check_branch
          %863 = sbr.rel (%p861) target = $region76
        $region75: #{tpu_custom_call.1} parent=43 // pred_region
          %v864 = vld [vmem:[#allocation2] sm:$0xff]
          %v865 = vld [vmem:[#allocation2 + $0x8] sm:$0xff]
          %v866 = vld [vmem:[#allocation2 + $0x10] sm:$0xff]
          %v867 = vld [vmem:[#allocation2 + $0x18] sm:$0xff]
          %v868 = vld [vmem:[#allocation2 + $0x20] sm:$0xff]
          %v869 = vld [vmem:[#allocation2 + $0x28] sm:$0xff]
          %v870 = vld [vmem:[#allocation2 + $0x30] sm:$0xff]
          %v871 = vld [vmem:[#allocation2 + $0x38] sm:$0xff]
          %v872 = vld [vmem:[#allocation2 + $0x40] sm:$0xff]
          %v873 = vld [vmem:[#allocation2 + $0x48] sm:$0xff]
          %v874 = vld [vmem:[#allocation2 + $0x50] sm:$0xff]
          %v875 = vld [vmem:[#allocation2 + $0x58] sm:$0xff]
          %v876 = vld [vmem:[#allocation2 + $0x60] sm:$0xff]
          %v877 = vld [vmem:[#allocation2 + $0x68] sm:$0xff]
          %v878 = vld [vmem:[#allocation2 + $0x70] sm:$0xff]
          %v879 = vld [vmem:[#allocation2 + $0x78] sm:$0xff]
          %v880 = vld [vmem:[#allocation2 + $0x80] sm:$0xff]
          %v881 = vld [vmem:[#allocation2 + $0x88] sm:$0xff]
          %v882 = vld [vmem:[#allocation2 + $0x90] sm:$0xff]
          %v883 = vld [vmem:[#allocation2 + $0x98] sm:$0xff]
          %v884 = vld [vmem:[#allocation2 + $0xa0] sm:$0xff]
          %v885 = vld [vmem:[#allocation2 + $0xa8] sm:$0xff]
          %v886 = vld [vmem:[#allocation2 + $0xb0] sm:$0xff]
          %v887 = vld [vmem:[#allocation2 + $0xb8] sm:$0xff]
          %v888 = vld [vmem:[#allocation2 + $0xc0] sm:$0xff]
          %v889 = vld [vmem:[#allocation2 + $0xc8] sm:$0xff]
          %v890 = vld [vmem:[#allocation2 + $0xd0] sm:$0xff]
          %v891 = vld [vmem:[#allocation2 + $0xd8] sm:$0xff]
          %v892 = vld [vmem:[#allocation2 + $0xe0] sm:$0xff]
          %v893 = vld [vmem:[#allocation2 + $0xe8] sm:$0xff]
          %v894 = vld [vmem:[#allocation2 + $0xf0] sm:$0xff]
          %v895 = vld [vmem:[#allocation2 + $0xf8] sm:$0xff]
          %v896 = vld [vmem:[#allocation11] sm:$0x1]
          %v898 = vlaneseq
          %v899 = vshrl.u32 %v898, 7
          %v900 = vsub.s32 0, %v899
          %v901 = vrot.slane %v896, %v900
          %v903 = vmul.f32 %v864, %v901
          %v904 = vmul.f32 %v865, %v901
          %v905 = vmul.f32 %v866, %v901
          %v906 = vmul.f32 %v867, %v901
          %v907 = vmul.f32 %v868, %v901
          %v908 = vmul.f32 %v869, %v901
          %v909 = vmul.f32 %v870, %v901
          %v910 = vmul.f32 %v871, %v901
          %v911 = vmul.f32 %v872, %v901
          %v912 = vmul.f32 %v873, %v901
          %v913 = vmul.f32 %v874, %v901
          %v914 = vmul.f32 %v875, %v901
          %v915 = vmul.f32 %v876, %v901
          %v916 = vmul.f32 %v877, %v901
          %v917 = vmul.f32 %v878, %v901
          %v918 = vmul.f32 %v879, %v901
          %v919 = vmul.f32 %v880, %v901
          %v920 = vmul.f32 %v881, %v901
          %v921 = vmul.f32 %v882, %v901
          %v922 = vmul.f32 %v883, %v901
          %v923 = vmul.f32 %v884, %v901
          %v924 = vmul.f32 %v885, %v901
          %v925 = vmul.f32 %v886, %v901
          %v926 = vmul.f32 %v887, %v901
          %v927 = vmul.f32 %v888, %v901
          %v928 = vmul.f32 %v889, %v901
          %v929 = vmul.f32 %v890, %v901
          %v930 = vmul.f32 %v891, %v901
          %v931 = vmul.f32 %v892, %v901
          %v932 = vmul.f32 %v893, %v901
          %v933 = vmul.f32 %v894, %v901
          %v934 = vmul.f32 %v895, %v901
          %v935 = vld [vmem:[#allocation12] sm:$0x1]
          %v937 = vlaneseq
          %v938 = vshrl.u32 %v937, 7
          %v939 = vsub.s32 0, %v938
          %v940 = vrot.slane %v935, %v939
          %v942 = vadd.f32 %v903, %v940
          %v943 = vadd.f32 %v904, %v940
          %v944 = vadd.f32 %v905, %v940
          %v945 = vadd.f32 %v906, %v940
          %v946 = vadd.f32 %v907, %v940
          %v947 = vadd.f32 %v908, %v940
          %v948 = vadd.f32 %v909, %v940
          %v949 = vadd.f32 %v910, %v940
          %v950 = vadd.f32 %v911, %v940
          %v951 = vadd.f32 %v912, %v940
          %v952 = vadd.f32 %v913, %v940
          %v953 = vadd.f32 %v914, %v940
          %v954 = vadd.f32 %v915, %v940
          %v955 = vadd.f32 %v916, %v940
          %v956 = vadd.f32 %v917, %v940
          %v957 = vadd.f32 %v918, %v940
          %v958 = vadd.f32 %v919, %v940
          %v959 = vadd.f32 %v920, %v940
          %v960 = vadd.f32 %v921, %v940
          %v961 = vadd.f32 %v922, %v940
          %v962 = vadd.f32 %v923, %v940
          %v963 = vadd.f32 %v924, %v940
          %v964 = vadd.f32 %v925, %v940
          %v965 = vadd.f32 %v926, %v940
          %v966 = vadd.f32 %v927, %v940
          %v967 = vadd.f32 %v928, %v940
          %v968 = vadd.f32 %v929, %v940
          %v969 = vadd.f32 %v930, %v940
          %v970 = vadd.f32 %v931, %v940
          %v971 = vadd.f32 %v932, %v940
          %v972 = vadd.f32 %v933, %v940
          %v973 = vadd.f32 %v934, %v940
          %v974 = vmax.f32 %v942, 0.0
          %v975 = vmax.f32 %v943, 0.0
          %v976 = vmax.f32 %v944, 0.0
          %v977 = vmax.f32 %v945, 0.0
          %v978 = vmax.f32 %v946, 0.0
          %v979 = vmax.f32 %v947, 0.0
          %v980 = vmax.f32 %v948, 0.0
          %v981 = vmax.f32 %v949, 0.0
          %v982 = vmax.f32 %v950, 0.0
          %v983 = vmax.f32 %v951, 0.0
          %v984 = vmax.f32 %v952, 0.0
          %v985 = vmax.f32 %v953, 0.0
          %v986 = vmax.f32 %v954, 0.0
          %v987 = vmax.f32 %v955, 0.0
          %v988 = vmax.f32 %v956, 0.0
          %v989 = vmax.f32 %v957, 0.0
          %v990 = vmax.f32 %v958, 0.0
          %v991 = vmax.f32 %v959, 0.0
          %v992 = vmax.f32 %v960, 0.0
          %v993 = vmax.f32 %v961, 0.0
          %v994 = vmax.f32 %v962, 0.0
          %v995 = vmax.f32 %v963, 0.0
          %v996 = vmax.f32 %v964, 0.0
          %v997 = vmax.f32 %v965, 0.0
          %v998 = vmax.f32 %v966, 0.0
          %v999 = vmax.f32 %v967, 0.0
          %v1000 = vmax.f32 %v968, 0.0
          %v1001 = vmax.f32 %v969, 0.0
          %v1002 = vmax.f32 %v970, 0.0
          %v1003 = vmax.f32 %v971, 0.0
          %v1004 = vmax.f32 %v972, 0.0
          %v1005 = vmax.f32 %v973, 0.0
          %1006 = vst [vmem:[%s401] sm:$0xff] %v974
          %1007 = vst [vmem:[%s401 + $0x8] sm:$0xff] %v975
          %1008 = vst [vmem:[%s401 + $0x10] sm:$0xff] %v976
          %1009 = vst [vmem:[%s401 + $0x18] sm:$0xff] %v977
          %1010 = vst [vmem:[%s401 + $0x20] sm:$0xff] %v978
          %1011 = vst [vmem:[%s401 + $0x28] sm:$0xff] %v979
          %1012 = vst [vmem:[%s401 + $0x30] sm:$0xff] %v980
          %1013 = vst [vmem:[%s401 + $0x38] sm:$0xff] %v981
          %1014 = vst [vmem:[%s401 + $0x40] sm:$0xff] %v982
          %1015 = vst [vmem:[%s401 + $0x48] sm:$0xff] %v983
          %1016 = vst [vmem:[%s401 + $0x50] sm:$0xff] %v984
          %1017 = vst [vmem:[%s401 + $0x58] sm:$0xff] %v985
          %1018 = vst [vmem:[%s401 + $0x60] sm:$0xff] %v986
          %1019 = vst [vmem:[%s401 + $0x68] sm:$0xff] %v987
          %1020 = vst [vmem:[%s401 + $0x70] sm:$0xff] %v988
          %1021 = vst [vmem:[%s401 + $0x78] sm:$0xff] %v989
          %1022 = vst [vmem:[%s401 + $0x80] sm:$0xff] %v990
          %1023 = vst [vmem:[%s401 + $0x88] sm:$0xff] %v991
          %1024 = vst [vmem:[%s401 + $0x90] sm:$0xff] %v992
          %1025 = vst [vmem:[%s401 + $0x98] sm:$0xff] %v993
          %1026 = vst [vmem:[%s401 + $0xa0] sm:$0xff] %v994
          %1027 = vst [vmem:[%s401 + $0xa8] sm:$0xff] %v995
          %1028 = vst [vmem:[%s401 + $0xb0] sm:$0xff] %v996
          %1029 = vst [vmem:[%s401 + $0xb8] sm:$0xff] %v997
          %1030 = vst [vmem:[%s401 + $0xc0] sm:$0xff] %v998
          %1031 = vst [vmem:[%s401 + $0xc8] sm:$0xff] %v999
          %1032 = vst [vmem:[%s401 + $0xd0] sm:$0xff] %v1000
          %1033 = vst [vmem:[%s401 + $0xd8] sm:$0xff] %v1001
          %1034 = vst [vmem:[%s401 + $0xe0] sm:$0xff] %v1002
          %1035 = vst [vmem:[%s401 + $0xe8] sm:$0xff] %v1003
          %1036 = vst [vmem:[%s401 + $0xf0] sm:$0xff] %v1004
          %1037 = vst [vmem:[%s401 + $0xf8] sm:$0xff] %v1005
        $region76: #{tpu_custom_call.1} parent=43 // pred_fallthru
          _
        %s1038 = sand.u32 %s215, 1
        %s1039 = scalar_lea.sflag [#allocation5], %s1038
        %s1040 = sand.u32 %s215, 1
        %s1041 = smul.addr %s1040, 256
        %s1042 = scalar_lea.vmem [#allocation14], %s1041
        // Predicated region
        $region77: #{tpu_custom_call.1} parent=43 // pred_check
          %p1043 = pneg %p225
        $region78: #{tpu_custom_call.1} parent=43 // pred_check_branch
          %1045 = sbr.rel (%p1043) target = $region80
        $region79: #{tpu_custom_call.1} parent=43 // pred_region
          %s1046 = smul.u32 32, %s31
          %s1048 = ssub.s32 4096, 4096
          %1049 = vsyncadd %s1039, %s1048
          %s1050 = sadd.s32 %s32, %s1046
          %s1051 = smul.addr %s1050, 128
          %s1052 = scalar_lea.hbm %s6, %s1051
          %s1053 = sshll.u32 %s1042, 4
          %s1054 = int_to_ptr.vmem [resolvable:$true] %s1053
          %1059 = dma.vmem_to_hbm [thread:$0]  %s1054, 4096, %s1052, %s1039, 128, 128, 8
        $region80: #{tpu_custom_call.1} parent=43 // pred_fallthru
          _
      $region44: #{tpu_custom_call.1} parent=5 // pred_fallthru
        _
      %p1060 = scmp.le.s32.totalorder 2, %s21
      // Predicated region
      $region81: #{tpu_custom_call.1} parent=5 // pred_check
        %p1061 = pneg %p1060
      $region82: #{tpu_custom_call.1} parent=5 // pred_check_branch
        %1063 = sbr.rel (%p1061) target = $region84
      $region83: #{tpu_custom_call.1} parent=5 // pred_region
        %s1064 = ssub.s32 %s21, 2
        // Predicated region
        $region85: #{tpu_custom_call.1} parent=83 // pred_check
          %p1065 = pneg %p231
        $region86: #{tpu_custom_call.1} parent=83 // pred_check_branch
          %1067 = sbr.rel (%p1065) target = $region88
        $region87: #{tpu_custom_call.1} parent=83 // pred_region
          %s1068 = sand.u32 %s216, 1
          %s1069 = scalar_lea.sflag [#allocation5], %s1068
          %s1070 = sand.u32 %s216, 1
          %s1071 = smul.addr %s1070, 256
          %s1072 = scalar_lea.vmem [#allocation14], %s1071
          %1073 = dma.done %s1069, 4096
        $region88: #{tpu_custom_call.1} parent=83 // pred_fallthru
          _
      $region84: #{tpu_custom_call.1} parent=5 // pred_fallthru
        _
    $region6: #{tpu_custom_call.1} parent=1 // loop_footer
      %s25 = sadd.s32 1, %s21
    $region7: #{tpu_custom_call.1} parent=1 // loop_footer_branch
      %20 = sbr.rel target = $region3
    $region8: #{tpu_custom_call.1} parent=1 // loop_exit
      _
    %1074 = vsyncpa [#allocation4], 1
    %s1075 = scalar_lea.sflag [#allocation4], 1
    %1076 = vsyncpa %s1075, 1
    %1077 = vsyncpa [#allocation7], 1
    %1078 = vsyncpa [#allocation10], 1
    %1079 = vsyncpa [#allocation13], 1
    %1080 = vsyncpa [#allocation5], 1
    %s1081 = scalar_lea.sflag [#allocation5], 1
    %1082 = vsyncpa %s1081, 1

</llo_original>
